<compile_context>
chip_gen: v7x
topology: tpu7x:2x2x1
jax: 0.10.0
libtpu: 0.0.40
codegen_flags: <defaults>
</compile_context>

<pallas_src>
import functools

import jax
import jax.numpy as jnp
from jax.experimental import pallas as pl
from jax.experimental.pallas import tpu as pltpu

_LANES = 128


def _round_up(x, m):
    return ((x + m - 1) // m) * m


# ----------------------------------------------------------------------------
# In-kernel building blocks (traced inside the single fused Pallas kernel).
# ----------------------------------------------------------------------------
def _prep_adj(adj, eye, *, clamp):
    """clamp(min=0)? + I, then fold D^-1/2 . D^-1/2 into the adjacency.

    Done once per stack so no per-layer degree multiply remains.  deg >= 1
    after +I so the PyTorch isinf guard is dead and omitted.
    """
    a = jnp.maximum(adj, 0.0) if clamp else adj
    a = a + eye
    deg = jnp.sum(a, axis=-1, keepdims=True) + 1e-5            # (B, N, 1)
    dis = jax.lax.rsqrt(deg)                                   # never inf
    # "Transpose" dis to (B, 1, N) with a masked sublane reduction against the
    # identity; this avoids a lane<->sublane relayout of the degree vector.
    dis_t = jnp.sum(dis * eye, axis=-2, keepdims=True)         # dis_t[b,0,j] = dis[b,j]
    return a * dis * dis_t                                     # D^-1/2 (A+I) D^-1/2


def _graph_conv(a_n, h, w_ref, b_ref, apply_act, mxu_dtype):
    """GraphConv: y = A_n h W + b, LeakyReLU(0.2)?, L2-normalize(dim=-1)."""
    bsz, n, din = h.shape
    agg = jnp.einsum('bij,bjd->bid', a_n.astype(mxu_dtype), h.astype(mxu_dtype),
                     preferred_element_type=jnp.float32)
    w = w_ref[...]
    dout = w.shape[1]
    # One (B*N, Din) x (Din, Dout) MXU matmul instead of B sliver-sized batched
    # ones: the RHS is pushed once and reused across all B*N rows.  N is a
    # sublane multiple at these shapes so both reshapes are layout-preserving.
    y = jnp.dot(agg.reshape(bsz * n, din).astype(mxu_dtype), w.astype(mxu_dtype),
                preferred_element_type=jnp.float32) + b_ref[...]
    y = y.reshape(bsz, n, dout)
    if apply_act:
        y = jnp.where(y > 0, y, 0.2 * y)                       # LeakyReLU(0.2)
    ss = jnp.sum(y * y, axis=-1, keepdims=True)
    return y * jax.lax.rsqrt(jnp.maximum(ss, 1e-24))           # y / max(||y||2, 1e-12)


def _batch_norm(h):
    """apply_bn(): fresh BatchNorm1d(num_nodes), training mode, gamma=1, beta=0."""
    mean = jnp.mean(h, axis=(0, 2), keepdims=True)
    var = jnp.mean((h - mean) ** 2, axis=(0, 2), keepdims=True)
    return (h - mean) * jax.lax.rsqrt(var + 1e-5)


def _gcn_stack(h, a_n, layer_refs, mxu_dtype):
    """conv_first -> BN, (conv_block -> BN -> +residual)*, conv_last."""
    w_ref, b_ref = layer_refs[0]
    h = _batch_norm(_graph_conv(a_n, h, w_ref, b_ref, True, mxu_dtype))
    for (w_ref, b_ref) in layer_refs[1:-1]:
        h = _batch_norm(_graph_conv(a_n, h, w_ref, b_ref, True, mxu_dtype)) + h
    w_ref, b_ref = layer_refs[-1]
    return _graph_conv(a_n, h, w_ref, b_ref, False, mxu_dtype)


# ----------------------------------------------------------------------------
# The fused NetGe forward kernel: single program, no grid (BatchNorm couples
# the whole batch and every tensor is far below VMEM capacity at these shapes).
# ----------------------------------------------------------------------------
def _net_ge_kernel(*refs, n_dec, n_enc, mxu_dtype):
    n_in = 2 + 2 * (n_dec + n_enc) + 4
    x_ref, adj_ref = refs[0], refs[1]

    def layer_refs(start, count):
        return [(refs[start + 2 * i], refs[start + 2 * i + 1]) for i in range(count)]

    dec = layer_refs(2, n_dec)
    enc = layer_refs(2 + 2 * n_dec, n_enc)
    p0 = 2 + 2 * (n_dec + n_enc)
    w1_ref, b1_ref, w2_ref, b2_ref = refs[p0], refs[p0 + 1], refs[p0 + 2], refs[p0 + 3]
    x_fake_ref, a_fake_hbm, x2_ref, feat_ref = refs[n_in:n_in + 4]
    a_stage, dma_sem = refs[n_in + 4], refs[n_in + 5]

    x = x_ref[...].astype(jnp.float32)        # (B, N, E)
    adj = adj_ref[...].astype(jnp.float32)    # (B, N, N)
    n = adj.shape[-1]

    # Identity built once and shared by both stacks.
    row = jax.lax.broadcasted_iota(jnp.int32, (n, n), 0)
    col = jax.lax.broadcasted_iota(jnp.int32, (n, n), 1)
    eye = (row == col).astype(jnp.float32)[None, :, :]

    # --- stru_decoder first: sigmoid(x x^T).  Stage in VMEM and start its HBM
    #     writeback now so the DMA is hidden under both GraphConv stacks.
    s = jnp.einsum('bnd,bmd->bnm', x.astype(mxu_dtype), x.astype(mxu_dtype),
                   preferred_element_type=jnp.float32)
    a_fake = jax.nn.sigmoid(s)
    a_stage[...] = a_fake
    a_copy = pltpu.make_async_copy(a_stage, a_fake_hbm, dma_sem)
    a_copy.start()

    # --- attr_decoder on (x, adj) ---
    a_dec = _prep_adj(adj, eye, clamp=True)
    x_fake = _gcn_stack(x, a_dec, dec, mxu_dtype)              # (B, N, Ipad)
    x_fake_ref[...] = x_fake.astype(x_fake_ref.dtype)

    # --- shared_encoder on (x_fake, a_fake); sigmoid output is already >= 0,
    #     so the clamp (dead code in the reference) is dropped here.
    a_enc = _prep_adj(a_fake, eye, clamp=False)
    x2 = _gcn_stack(x_fake, a_enc, enc, mxu_dtype)             # (B, N, Epad)
    x2_ref[...] = x2.astype(x2_ref.dtype)

    # --- readout: max over nodes + projection head (fused epilogue) ---
    m = jnp.max(x2, axis=1)                                    # (B, Epad)
    h = jnp.dot(m.astype(mxu_dtype), w1_ref[...].astype(mxu_dtype),
                preferred_element_type=jnp.float32) + b1_ref[...]
    h = jnp.where(h > 0, h, 0.2 * h)                           # LeakyReLU(0.2)
    feat = jnp.dot(h.astype(mxu_dtype), w2_ref[...].astype(mxu_dtype),
                   preferred_element_type=jnp.float32) + b2_ref[...]
    feat_ref[...] = feat.astype(feat_ref.dtype)

    a_copy.wait()                                              # a_fake writeback done


# ----------------------------------------------------------------------------
# Wrapper: weight padding (lane-dense stores), specs, VMEM budget.
# ----------------------------------------------------------------------------
def _pad_out_cols(w, b, to):
    dout = w.shape[1]
    if dout == to:
        return w, b
    return (jnp.pad(w, ((0, 0), (0, to - dout))),
            jnp.pad(b, ((0, to - dout),)))


def _pad_in_rows(w, to):
    din = w.shape[0]
    if din == to:
        return w
    return jnp.pad(w, ((0, to - din), (0, 0)))


def _vmem_limit_bytes(batch, n, feat_dims):
    """Scoped-VMEM budget for the no-grid, everything-resident design.

    The live set is a handful of (B,N,N) buffers (adj, folded adjacency x2,
    a_fake + its DMA staging) plus (B,N,D) activations/residuals.  At B=2 this
    crosses the 32 MiB default scoped limit near N~800 and v7x's 64 MiB
    physical VMEM near N~1.2k; past that the node dimension must be tiled
    (grid over row blocks) or the two stacks split into separate calls.
    """
    f32 = 4
    d = max(feat_dims + (_LANES,))
    est = 6 * batch * n * n * f32 + 10 * batch * n * d * f32 + (4 << 20)
    return int(min(max(est, 32 << 20), 96 << 20))


def net_ge_forward(x, adj, params, *, mxu_dtype=jnp.float32):
    """Fused NetGe.forward -> (x_fake, a_fake, x2, feat)."""
    # TODO(synk): dropout is 0.0 in this configuration, so nn.Dropout is a
    # no-op and is not implemented as a kernel.
    # TODO(synk): on v7x a core_map/CORE_PARALLEL split over the node dim
    # (BN1d stats are per-node, so node-splitting is BN-safe) would use both
    # TensorCores; at these shapes (a few KiB) it is not worth it.
    B, N, _ = x.shape
    dec = list(params["dec"])
    enc = list(params["enc"])
    w1, b1, w2, b2 = params["proj"]

    input_dim = dec[-1][0].shape[1]
    hidden_dim = dec[0][0].shape[1]
    emb_dim = enc[-1][0].shape[1]
    pad_i = _round_up(input_dim, _LANES)
    pad_e = _round_up(emb_dim, _LANES)

    # Lane-dense outputs: zero-pad the columns of each stack's last layer and
    # of the proj head to a multiple of 128 lanes; consumers of the padded
    # activations get matching zero rows, so results are unchanged and the
    # wrapper slices the padding off.  (Hidden layers are NOT padded: BN stats
    # over the feature dim would change.)
    dec_p = dec[:-1] + [_pad_out_cols(*dec[-1], pad_i)]
    enc_p = ([(_pad_in_rows(enc[0][0], pad_i), enc[0][1])]
             + enc[1:-1]
             + [_pad_out_cols(*enc[-1], pad_e)])
    w1_p = _pad_in_rows(w1, pad_e)               # consumes the padded node-max
    w2_p, b2_p = _pad_out_cols(w2, b2, pad_e)

    flat = [x, adj]
    for (w, b) in dec_p + enc_p:
        flat += [w, b.reshape(1, -1)]
    flat += [w1_p, b1.reshape(1, -1), w2_p, b2_p.reshape(1, -1)]

    kernel = functools.partial(_net_ge_kernel, n_dec=len(dec), n_enc=len(enc),
                               mxu_dtype=mxu_dtype)

    out_shape = (
        jax.ShapeDtypeStruct((B, N, pad_i), jnp.float32),   # x_fake (padded lanes)
        jax.ShapeDtypeStruct((B, N, N), jnp.float32),       # a_fake
        jax.ShapeDtypeStruct((B, N, pad_e), jnp.float32),   # x2 (padded lanes)
        jax.ShapeDtypeStruct((B, pad_e), jnp.float32),      # feat (padded lanes)
    )
    vmem_spec = pl.BlockSpec(memory_space=pltpu.MemorySpace.VMEM)
    out_specs = (
        vmem_spec,
        pl.BlockSpec(memory_space=pl.ANY),   # a_fake: written via manual async DMA
        vmem_spec,
        vmem_spec,
    )

    x_fake_p, a_fake, x2_p, feat_p = pl.pallas_call(
        kernel,
        out_shape=out_shape,
        in_specs=[pl.BlockSpec(memory_space=pltpu.MemorySpace.VMEM) for _ in flat],
        out_specs=out_specs,
        scratch_shapes=[
            pltpu.VMEM((B, N, N), jnp.float32),   # a_fake staging buffer
            pltpu.SemaphoreType.DMA,              # its writeback semaphore
        ],
        compiler_params=pltpu.CompilerParams(
            vmem_limit_bytes=_vmem_limit_bytes(B, N, (hidden_dim, pad_i, pad_e))),
    )(*flat)

    return (x_fake_p[..., :input_dim], a_fake,
            x2_p[..., :emb_dim], feat_p[..., :emb_dim])


# ----------------------------------------------------------------------------
# Deterministic parameter init (shapes follow the PyTorch module).
# ----------------------------------------------------------------------------
def xavier_uniform(key, fan_in, fan_out, gain):
    bound = gain * (6.0 / (fan_in + fan_out)) ** 0.5
    return jax.random.uniform(key, (fan_in, fan_out), jnp.float32, -bound, bound)


def make_params(key, input_dim, hidden_dim, embedding_dim, num_layers):
    gain = (2.0 / (1.0 + 0.2 ** 2)) ** 0.5  # calculate_gain('leaky_relu', 0.2)
    keys = iter(jax.random.split(key, 64))

    def conv_layer(din, dout):
        return (xavier_uniform(next(keys), din, dout, gain),
                jnp.zeros((dout,), jnp.float32))

    # attr_decoder: embedding_dim -> hidden -> ... -> input_dim
    dec = ([conv_layer(embedding_dim, hidden_dim)]
           + [conv_layer(hidden_dim, hidden_dim) for _ in range(num_layers - 2)]
           + [conv_layer(hidden_dim, input_dim)])
    # shared_encoder: input_dim -> hidden -> ... -> embedding_dim
    enc = ([conv_layer(input_dim, hidden_dim)]
           + [conv_layer(hidden_dim, hidden_dim) for _ in range(num_layers - 2)]
           + [conv_layer(hidden_dim, embedding_dim)])
    # proj_head: Linear(E,E) -> LeakyReLU(0.2) -> Linear(E,E); weights (in, out)
    proj = (0.1 * jax.random.normal(next(keys), (embedding_dim, embedding_dim), jnp.float32),
            jnp.zeros((embedding_dim,), jnp.float32),
            0.1 * jax.random.normal(next(keys), (embedding_dim, embedding_dim), jnp.float32),
            jnp.zeros((embedding_dim,), jnp.float32))
    return {"dec": dec, "enc": enc, "proj": proj}


# ----------------------------------------------------------------------------
# Plain-JAX reference mirroring the PyTorch forward (for a sanity check).
# ----------------------------------------------------------------------------
def _ref_graph_conv(x, adj, w, b, act):
    adj = jnp.maximum(adj, 0.0)
    n = adj.shape[-1]
    a = adj + jnp.eye(n, dtype=adj.dtype)[None]
    deg = jnp.sum(a, axis=-1) + 1e-5
    dis = deg ** -0.5
    a_n = a * dis[:, :, None] * dis[:, None, :]
    y = jnp.matmul(jnp.matmul(a_n, x), w) + b
    if act:
        y = jnp.where(y > 0, y, 0.2 * y)
    nrm = jnp.sqrt(jnp.sum(y * y, axis=-1, keepdims=True))
    return y / jnp.maximum(nrm, 1e-12)


def _ref_bn(x):
    mean = jnp.mean(x, axis=(0, 2), keepdims=True)
    var = jnp.mean((x - mean) ** 2, axis=(0, 2), keepdims=True)
    return (x - mean) / jnp.sqrt(var + 1e-5)


def _ref_stack(x, adj, layers):
    w, b = layers[0]
    h = _ref_bn(_ref_graph_conv(x, adj, w, b, True))
    for (w, b) in layers[1:-1]:
        h = _ref_bn(_ref_graph_conv(h, adj, w, b, True)) + h
    w, b = layers[-1]
    return _ref_graph_conv(h, adj, w, b, False)


def _ref_forward(x, adj, params):
    x_fake = _ref_stack(x, adj, params["dec"])
    a_fake = jax.nn.sigmoid(jnp.einsum('bnd,bmd->bnm', x, x))
    x2 = _ref_stack(x_fake, a_fake, params["enc"])
    w1, b1, w2, b2 = params["proj"]
    m = jnp.max(x2, axis=1)
    h = m @ w1 + b1
    h = jnp.where(h > 0, h, 0.2 * h)
    return x_fake, a_fake, x2, h @ w2 + b2


if __name__ == "__main__":
    B, N = 2, 8
    input_dim, hidden_dim, embedding_dim, num_layers = 16, 32, 8, 3

    key = jax.random.PRNGKey(0)
    k_x, k_adj, k_p = jax.random.split(key, 3)
    # NetGe.forward(x, adj): x carries embedding_dim features (fed to attr_decoder).
    x = jax.random.normal(k_x, (B, N, embedding_dim), jnp.float32)
    adj = jax.random.uniform(k_adj, (B, N, N), jnp.float32, -0.5, 1.0)
    params = make_params(k_p, input_dim, hidden_dim, embedding_dim, num_layers)

    x_fake, a_fake, x2, feat = jax.jit(net_ge_forward)(x, adj, params)
    jax.block_until_ready((x_fake, a_fake, x2, feat))

    assert x_fake.shape == (B, N, input_dim)
    assert a_fake.shape == (B, N, N)
    assert x2.shape == (B, N, embedding_dim)
    assert feat.shape == (B, embedding_dim)

    # Sanity check against a plain-JAX reference of the PyTorch forward.
    with jax.default_matmul_precision("highest"):
        r_xf, r_af, r_x2, r_feat = _ref_forward(x, adj, params)
    for got, want in ((x_fake, r_xf), (a_fake, r_af), (x2, r_x2), (feat, r_feat)):
        assert float(jnp.max(jnp.abs(got - want))) < 5e-2

    # bf16 MXU-operand path (the v6e/v7x throughput lever); accumulation, BN,
    # degree normalization and L2-norm remain f32 inside the kernel.
    fwd_bf16 = jax.jit(functools.partial(net_ge_forward, mxu_dtype=jnp.bfloat16))
    outs_bf16 = fwd_bf16(x, adj, params)
    jax.block_until_ready(outs_bf16)
    for got, want in zip(outs_bf16, (r_xf, r_af, r_x2, r_feat)):
        assert float(jnp.max(jnp.abs(got - want))) < 2e-1

    print("KERNEL_OK")
</pallas_src>

<mosaic_0001>
module attributes {stable_mosaic.version = 11 : i64} {
  func.func @_net_ge_kernel(%arg0: memref<2x8x8xf32, #tpu.memory_space<vmem>>, %arg1: memref<2x8x8xf32, #tpu.memory_space<vmem>>, %arg2: memref<8x32xf32, #tpu.memory_space<vmem>>, %arg3: memref<1x32xf32, #tpu.memory_space<vmem>>, %arg4: memref<32x32xf32, #tpu.memory_space<vmem>>, %arg5: memref<1x32xf32, #tpu.memory_space<vmem>>, %arg6: memref<32x128xf32, #tpu.memory_space<vmem>>, %arg7: memref<1x128xf32, #tpu.memory_space<vmem>>, %arg8: memref<128x32xf32, #tpu.memory_space<vmem>>, %arg9: memref<1x32xf32, #tpu.memory_space<vmem>>, %arg10: memref<32x32xf32, #tpu.memory_space<vmem>>, %arg11: memref<1x32xf32, #tpu.memory_space<vmem>>, %arg12: memref<32x128xf32, #tpu.memory_space<vmem>>, %arg13: memref<1x128xf32, #tpu.memory_space<vmem>>, %arg14: memref<128x8xf32, #tpu.memory_space<vmem>>, %arg15: memref<1x8xf32, #tpu.memory_space<vmem>>, %arg16: memref<8x128xf32, #tpu.memory_space<vmem>>, %arg17: memref<1x128xf32, #tpu.memory_space<vmem>>, %arg18: memref<2x8x128xf32, #tpu.memory_space<vmem>>, %arg19: memref<2x8x8xf32, #tpu.memory_space<any>>, %arg20: memref<2x8x128xf32, #tpu.memory_space<vmem>>, %arg21: memref<2x128xf32, #tpu.memory_space<vmem>>, %arg22: memref<2x8x8xf32, #tpu.memory_space<vmem>>, %arg23: memref<!tpu.dma_semaphore, #tpu.memory_space<semaphore_mem>>) attributes {dimension_semantics = [], scalar_prefetch = 0 : i64, scratch_operands = 2 : i64, tpu.core_type = #tpu.core_type<tc>} {
    %c0 = arith.constant 0 : index
    %c0_0 = arith.constant 0 : index
    %c0_1 = arith.constant 0 : index
    %0 = vector.load %arg0[%c0, %c0_0, %c0_1] : memref<2x8x8xf32, #tpu.memory_space<vmem>>, vector<2x8x8xf32>
    %c0_2 = arith.constant 0 : index
    %c0_3 = arith.constant 0 : index
    %c0_4 = arith.constant 0 : index
    %1 = vector.load %arg1[%c0_2, %c0_3, %c0_4] : memref<2x8x8xf32, #tpu.memory_space<vmem>>, vector<2x8x8xf32>
    %2 = tpu.iota {dimensions = array<i32: 0>} : vector<8x8xi32>
    %3 = tpu.iota {dimensions = array<i32: 1>} : vector<8x8xi32>
    %4 = arith.cmpi eq, %2, %3 : vector<8x8xi32>
    %5 = arith.extui %4 : vector<8x8xi1> to vector<8x8xi32>
    %6 = arith.sitofp %5 : vector<8x8xi32> to vector<8x8xf32>
    %7 = vector.shape_cast %6 : vector<8x8xf32> to vector<1x8x8xf32>
    "tpu.trace_start"() <{level = 10 : i32, message = "bnd,bmd->bnm"}> : () -> ()
    %cst = arith.constant dense<0.000000e+00> : vector<2x8x8xf32>
    %8 = tpu.matmul %0, %0, %cst {dimension_numbers = #tpu.dot_dimension_numbers<[2], [2], [1], [1], [0, 0, 0, 1, 1, 1], [0], [0]>} : vector<2x8x8xf32>, vector<2x8x8xf32>, vector<2x8x8xf32> -> vector<2x8x8xf32>
    "tpu.trace_stop"() : () -> ()
    %9 = arith.negf %8 : vector<2x8x8xf32>
    %10 = math.exp %9 : vector<2x8x8xf32>
    %cst_5 = arith.constant 1.000000e+00 : f32
    %11 = vector.broadcast %cst_5 : f32 to vector<2x8x8xf32>
    %12 = arith.addf %11, %10 : vector<2x8x8xf32>
    %13 = arith.divf %11, %12 : vector<2x8x8xf32>
    %c0_6 = arith.constant 0 : index
    %c0_7 = arith.constant 0 : index
    %c0_8 = arith.constant 0 : index
    %14 = vector.load %arg22[%c0_6, %c0_7, %c0_8] : memref<2x8x8xf32, #tpu.memory_space<vmem>>, vector<2x8x8xf32>
    tpu.vector_store %arg22[%c0_6, %c0_7, %c0_8], %13 {strides = array<i32>} : memref<2x8x8xf32, #tpu.memory_space<vmem>>, vector<2x8x8xf32>,
    tpu.enqueue_dma source(%arg22 : memref<2x8x8xf32, #tpu.memory_space<vmem>>) target(%arg19 : memref<2x8x8xf32, #tpu.memory_space<any>>) target_semaphore(%arg23 : memref<!tpu.dma_semaphore, #tpu.memory_space<semaphore_mem>>)
    %cst_9 = arith.constant 0.000000e+00 : f32
    %15 = vector.broadcast %cst_9 : f32 to vector<2x8x8xf32>
    %16 = arith.maximumf %1, %15 : vector<2x8x8xf32>
    %17 = vector.broadcast %7 : vector<1x8x8xf32> to vector<2x8x8xf32>
    %18 = arith.addf %16, %17 : vector<2x8x8xf32>
    %cst_10 = arith.constant dense<0.000000e+00> : vector<2x8xf32>
    %19 = vector.multi_reduction <add>, %18, %cst_10 [2] : vector<2x8x8xf32> to vector<2x8xf32>
    %20 = vector.shape_cast %19 : vector<2x8xf32> to vector<2x8x1xf32>
    %cst_11 = arith.constant 9.99999974E-6 : f32
    %21 = vector.broadcast %cst_11 : f32 to vector<2x8x1xf32>
    %22 = arith.addf %20, %21 : vector<2x8x1xf32>
    %23 = math.rsqrt %22 : vector<2x8x1xf32>
    %24 = vector.broadcast %23 : vector<2x8x1xf32> to vector<2x8x8xf32>
    %25 = vector.broadcast %7 : vector<1x8x8xf32> to vector<2x8x8xf32>
    %26 = arith.mulf %24, %25 : vector<2x8x8xf32>
    %cst_12 = arith.constant dense<0.000000e+00> : vector<2x8xf32>
    %27 = vector.multi_reduction <add>, %26, %cst_12 [1] : vector<2x8x8xf32> to vector<2x8xf32>
    %28 = vector.shape_cast %27 : vector<2x8xf32> to vector<2x1x8xf32>
    %29 = vector.broadcast %23 : vector<2x8x1xf32> to vector<2x8x8xf32>
    %30 = arith.mulf %18, %29 : vector<2x8x8xf32>
    %31 = vector.broadcast %28 : vector<2x1x8xf32> to vector<2x8x8xf32>
    %32 = arith.mulf %30, %31 : vector<2x8x8xf32>
    "tpu.trace_start"() <{level = 10 : i32, message = "bij,bjd->bid"}> : () -> ()
    %cst_13 = arith.constant dense<0.000000e+00> : vector<2x8x8xf32>
    %33 = tpu.matmul %32, %0, %cst_13 {dimension_numbers = #tpu.dot_dimension_numbers<[2], [1], [1], [2], [0, 0, 0, 1, 1, 2], [0], [0]>} : vector<2x8x8xf32>, vector<2x8x8xf32>, vector<2x8x8xf32> -> vector<2x8x8xf32>
    "tpu.trace_stop"() : () -> ()
    %c0_14 = arith.constant 0 : index
    %c0_15 = arith.constant 0 : index
    %34 = vector.load %arg2[%c0_14, %c0_15] : memref<8x32xf32, #tpu.memory_space<vmem>>, vector<8x32xf32>
    %35 = vector.shape_cast %33 : vector<2x8x8xf32> to vector<16x8xf32>
    %cst_16 = arith.constant dense<0.000000e+00> : vector<16x32xf32>
    %36 = tpu.matmul %35, %34, %cst_16 {dimension_numbers = #tpu.dot_dimension_numbers<[1], [0], [0], [1], [0, 0, 1, 1], [], []>} : vector<16x8xf32>, vector<8x32xf32>, vector<16x32xf32> -> vector<16x32xf32>
    %c0_17 = arith.constant 0 : index
    %c0_18 = arith.constant 0 : index
    %37 = vector.load %arg3[%c0_17, %c0_18] : memref<1x32xf32, #tpu.memory_space<vmem>>, vector<1x32xf32>
    %38 = vector.broadcast %37 : vector<1x32xf32> to vector<16x32xf32>
    %39 = arith.addf %36, %38 : vector<16x32xf32>
    %40 = vector.shape_cast %39 : vector<16x32xf32> to vector<2x8x32xf32>
    %cst_19 = arith.constant 0.000000e+00 : f32
    %41 = vector.broadcast %cst_19 : f32 to vector<2x8x32xf32>
    %42 = arith.cmpf ogt, %40, %41 : vector<2x8x32xf32>
    %cst_20 = arith.constant 2.000000e-01 : f32
    %43 = vector.broadcast %cst_20 : f32 to vector<2x8x32xf32>
    %44 = arith.mulf %43, %40 : vector<2x8x32xf32>
    %45 = arith.select %42, %40, %44 : vector<2x8x32xi1>, vector<2x8x32xf32>
    %46 = arith.mulf %45, %45 : vector<2x8x32xf32>
    %cst_21 = arith.constant dense<0.000000e+00> : vector<2x8xf32>
    %47 = vector.multi_reduction <add>, %46, %cst_21 [2] : vector<2x8x32xf32> to vector<2x8xf32>
    %48 = vector.shape_cast %47 : vector<2x8xf32> to vector<2x8x1xf32>
    %cst_22 = arith.constant 1.000000e-24 : f32
    %49 = vector.broadcast %cst_22 : f32 to vector<2x8x1xf32>
    %50 = arith.maximumf %48, %49 : vector<2x8x1xf32>
    %51 = math.rsqrt %50 : vector<2x8x1xf32>
    %52 = vector.broadcast %51 : vector<2x8x1xf32> to vector<2x8x32xf32>
    %53 = arith.mulf %45, %52 : vector<2x8x32xf32>
    %cst_23 = arith.constant dense<0.000000e+00> : vector<8xf32>
    %54 = vector.multi_reduction <add>, %53, %cst_23 [0, 2] : vector<2x8x32xf32> to vector<8xf32>
    %55 = vector.shape_cast %54 : vector<8xf32> to vector<1x8x1xf32>
    %cst_24 = arith.constant 6.400000e+01 : f32
    %56 = vector.broadcast %cst_24 : f32 to vector<1x8x1xf32>
    %57 = arith.divf %55, %56 : vector<1x8x1xf32>
    %58 = vector.broadcast %57 : vector<1x8x1xf32> to vector<2x8x32xf32>
    %59 = arith.subf %53, %58 : vector<2x8x32xf32>
    %60 = arith.mulf %59, %59 : vector<2x8x32xf32>
    %cst_25 = arith.constant dense<0.000000e+00> : vector<8xf32>
    %61 = vector.multi_reduction <add>, %60, %cst_25 [0, 2] : vector<2x8x32xf32> to vector<8xf32>
    %62 = vector.shape_cast %61 : vector<8xf32> to vector<1x8x1xf32>
    %cst_26 = arith.constant 6.400000e+01 : f32
    %63 = vector.broadcast %cst_26 : f32 to vector<1x8x1xf32>
    %64 = arith.divf %62, %63 : vector<1x8x1xf32>
    %65 = vector.broadcast %57 : vector<1x8x1xf32> to vector<2x8x32xf32>
    %66 = arith.subf %53, %65 : vector<2x8x32xf32>
    %cst_27 = arith.constant 9.99999974E-6 : f32
    %67 = vector.broadcast %cst_27 : f32 to vector<1x8x1xf32>
    %68 = arith.addf %64, %67 : vector<1x8x1xf32>
    %69 = math.rsqrt %68 : vector<1x8x1xf32>
    %70 = vector.broadcast %69 : vector<1x8x1xf32> to vector<2x8x32xf32>
    %71 = arith.mulf %66, %70 : vector<2x8x32xf32>
    "tpu.trace_start"() <{level = 10 : i32, message = "bij,bjd->bid"}> : () -> ()
    %cst_28 = arith.constant dense<0.000000e+00> : vector<2x8x32xf32>
    %72 = tpu.matmul %32, %71, %cst_28 {dimension_numbers = #tpu.dot_dimension_numbers<[2], [1], [1], [2], [0, 0, 0, 1, 1, 2], [0], [0]>} : vector<2x8x8xf32>, vector<2x8x32xf32>, vector<2x8x32xf32> -> vector<2x8x32xf32>
    "tpu.trace_stop"() : () -> ()
    %c0_29 = arith.constant 0 : index
    %c0_30 = arith.constant 0 : index
    %73 = vector.load %arg4[%c0_29, %c0_30] : memref<32x32xf32, #tpu.memory_space<vmem>>, vector<32x32xf32>
    %74 = vector.shape_cast %72 : vector<2x8x32xf32> to vector<16x32xf32>
    %cst_31 = arith.constant dense<0.000000e+00> : vector<16x32xf32>
    %75 = tpu.matmul %74, %73, %cst_31 {dimension_numbers = #tpu.dot_dimension_numbers<[1], [0], [0], [1], [0, 0, 1, 1], [], []>} : vector<16x32xf32>, vector<32x32xf32>, vector<16x32xf32> -> vector<16x32xf32>
    %c0_32 = arith.constant 0 : index
    %c0_33 = arith.constant 0 : index
    %76 = vector.load %arg5[%c0_32, %c0_33] : memref<1x32xf32, #tpu.memory_space<vmem>>, vector<1x32xf32>
    %77 = vector.broadcast %76 : vector<1x32xf32> to vector<16x32xf32>
    %78 = arith.addf %75, %77 : vector<16x32xf32>
    %79 = vector.shape_cast %78 : vector<16x32xf32> to vector<2x8x32xf32>
    %cst_34 = arith.constant 0.000000e+00 : f32
    %80 = vector.broadcast %cst_34 : f32 to vector<2x8x32xf32>
    %81 = arith.cmpf ogt, %79, %80 : vector<2x8x32xf32>
    %cst_35 = arith.constant 2.000000e-01 : f32
    %82 = vector.broadcast %cst_35 : f32 to vector<2x8x32xf32>
    %83 = arith.mulf %82, %79 : vector<2x8x32xf32>
    %84 = arith.select %81, %79, %83 : vector<2x8x32xi1>, vector<2x8x32xf32>
    %85 = arith.mulf %84, %84 : vector<2x8x32xf32>
    %cst_36 = arith.constant dense<0.000000e+00> : vector<2x8xf32>
    %86 = vector.multi_reduction <add>, %85, %cst_36 [2] : vector<2x8x32xf32> to vector<2x8xf32>
    %87 = vector.shape_cast %86 : vector<2x8xf32> to vector<2x8x1xf32>
    %cst_37 = arith.constant 1.000000e-24 : f32
    %88 = vector.broadcast %cst_37 : f32 to vector<2x8x1xf32>
    %89 = arith.maximumf %87, %88 : vector<2x8x1xf32>
    %90 = math.rsqrt %89 : vector<2x8x1xf32>
    %91 = vector.broadcast %90 : vector<2x8x1xf32> to vector<2x8x32xf32>
    %92 = arith.mulf %84, %91 : vector<2x8x32xf32>
    %cst_38 = arith.constant dense<0.000000e+00> : vector<8xf32>
    %93 = vector.multi_reduction <add>, %92, %cst_38 [0, 2] : vector<2x8x32xf32> to vector<8xf32>
    %94 = vector.shape_cast %93 : vector<8xf32> to vector<1x8x1xf32>
    %cst_39 = arith.constant 6.400000e+01 : f32
    %95 = vector.broadcast %cst_39 : f32 to vector<1x8x1xf32>
    %96 = arith.divf %94, %95 : vector<1x8x1xf32>
    %97 = vector.broadcast %96 : vector<1x8x1xf32> to vector<2x8x32xf32>
    %98 = arith.subf %92, %97 : vector<2x8x32xf32>
    %99 = arith.mulf %98, %98 : vector<2x8x32xf32>
    %cst_40 = arith.constant dense<0.000000e+00> : vector<8xf32>
    %100 = vector.multi_reduction <add>, %99, %cst_40 [0, 2] : vector<2x8x32xf32> to vector<8xf32>
    %101 = vector.shape_cast %100 : vector<8xf32> to vector<1x8x1xf32>
    %cst_41 = arith.constant 6.400000e+01 : f32
    %102 = vector.broadcast %cst_41 : f32 to vector<1x8x1xf32>
    %103 = arith.divf %101, %102 : vector<1x8x1xf32>
    %104 = vector.broadcast %96 : vector<1x8x1xf32> to vector<2x8x32xf32>
    %105 = arith.subf %92, %104 : vector<2x8x32xf32>
    %cst_42 = arith.constant 9.99999974E-6 : f32
    %106 = vector.broadcast %cst_42 : f32 to vector<1x8x1xf32>
    %107 = arith.addf %103, %106 : vector<1x8x1xf32>
    %108 = math.rsqrt %107 : vector<1x8x1xf32>
    %109 = vector.broadcast %108 : vector<1x8x1xf32> to vector<2x8x32xf32>
    %110 = arith.mulf %105, %109 : vector<2x8x32xf32>
    %111 = arith.addf %110, %71 : vector<2x8x32xf32>
    "tpu.trace_start"() <{level = 10 : i32, message = "bij,bjd->bid"}> : () -> ()
    %cst_43 = arith.constant dense<0.000000e+00> : vector<2x8x32xf32>
    %112 = tpu.matmul %32, %111, %cst_43 {dimension_numbers = #tpu.dot_dimension_numbers<[2], [1], [1], [2], [0, 0, 0, 1, 1, 2], [0], [0]>} : vector<2x8x8xf32>, vector<2x8x32xf32>, vector<2x8x32xf32> -> vector<2x8x32xf32>
    "tpu.trace_stop"() : () -> ()
    %c0_44 = arith.constant 0 : index
    %c0_45 = arith.constant 0 : index
    %113 = vector.load %arg6[%c0_44, %c0_45] : memref<32x128xf32, #tpu.memory_space<vmem>>, vector<32x128xf32>
    %114 = vector.shape_cast %112 : vector<2x8x32xf32> to vector<16x32xf32>
    %cst_46 = arith.constant dense<0.000000e+00> : vector<16x128xf32>
    %115 = tpu.matmul %114, %113, %cst_46 {dimension_numbers = #tpu.dot_dimension_numbers<[1], [0], [0], [1], [0, 0, 1, 1], [], []>} : vector<16x32xf32>, vector<32x128xf32>, vector<16x128xf32> -> vector<16x128xf32>
    %c0_47 = arith.constant 0 : index
    %c0_48 = arith.constant 0 : index
    %116 = vector.load %arg7[%c0_47, %c0_48] : memref<1x128xf32, #tpu.memory_space<vmem>>, vector<1x128xf32>
    %117 = vector.broadcast %116 : vector<1x128xf32> to vector<16x128xf32>
    %118 = arith.addf %115, %117 : vector<16x128xf32>
    %119 = vector.shape_cast %118 : vector<16x128xf32> to vector<2x8x128xf32>
    %120 = arith.mulf %119, %119 : vector<2x8x128xf32>
    %cst_49 = arith.constant dense<0.000000e+00> : vector<2x8xf32>
    %121 = vector.multi_reduction <add>, %120, %cst_49 [2] : vector<2x8x128xf32> to vector<2x8xf32>
    %122 = vector.shape_cast %121 : vector<2x8xf32> to vector<2x8x1xf32>
    %cst_50 = arith.constant 1.000000e-24 : f32
    %123 = vector.broadcast %cst_50 : f32 to vector<2x8x1xf32>
    %124 = arith.maximumf %122, %123 : vector<2x8x1xf32>
    %125 = math.rsqrt %124 : vector<2x8x1xf32>
    %126 = vector.broadcast %125 : vector<2x8x1xf32> to vector<2x8x128xf32>
    %127 = arith.mulf %119, %126 : vector<2x8x128xf32>
    %c0_51 = arith.constant 0 : index
    %c0_52 = arith.constant 0 : index
    %c0_53 = arith.constant 0 : index
    %128 = vector.load %arg18[%c0_51, %c0_52, %c0_53] : memref<2x8x128xf32, #tpu.memory_space<vmem>>, vector<2x8x128xf32>
    tpu.vector_store %arg18[%c0_51, %c0_52, %c0_53], %127 {strides = array<i32>} : memref<2x8x128xf32, #tpu.memory_space<vmem>>, vector<2x8x128xf32>,
    %129 = vector.broadcast %7 : vector<1x8x8xf32> to vector<2x8x8xf32>
    %130 = arith.addf %13, %129 : vector<2x8x8xf32>
    %cst_54 = arith.constant dense<0.000000e+00> : vector<2x8xf32>
    %131 = vector.multi_reduction <add>, %130, %cst_54 [2] : vector<2x8x8xf32> to vector<2x8xf32>
    %132 = vector.shape_cast %131 : vector<2x8xf32> to vector<2x8x1xf32>
    %cst_55 = arith.constant 9.99999974E-6 : f32
    %133 = vector.broadcast %cst_55 : f32 to vector<2x8x1xf32>
    %134 = arith.addf %132, %133 : vector<2x8x1xf32>
    %135 = math.rsqrt %134 : vector<2x8x1xf32>
    %136 = vector.broadcast %135 : vector<2x8x1xf32> to vector<2x8x8xf32>
    %137 = vector.broadcast %7 : vector<1x8x8xf32> to vector<2x8x8xf32>
    %138 = arith.mulf %136, %137 : vector<2x8x8xf32>
    %cst_56 = arith.constant dense<0.000000e+00> : vector<2x8xf32>
    %139 = vector.multi_reduction <add>, %138, %cst_56 [1] : vector<2x8x8xf32> to vector<2x8xf32>
    %140 = vector.shape_cast %139 : vector<2x8xf32> to vector<2x1x8xf32>
    %141 = vector.broadcast %135 : vector<2x8x1xf32> to vector<2x8x8xf32>
    %142 = arith.mulf %130, %141 : vector<2x8x8xf32>
    %143 = vector.broadcast %140 : vector<2x1x8xf32> to vector<2x8x8xf32>
    %144 = arith.mulf %142, %143 : vector<2x8x8xf32>
    "tpu.trace_start"() <{level = 10 : i32, message = "bij,bjd->bid"}> : () -> ()
    %cst_57 = arith.constant dense<0.000000e+00> : vector<2x8x128xf32>
    %145 = tpu.matmul %144, %127, %cst_57 {dimension_numbers = #tpu.dot_dimension_numbers<[2], [1], [1], [2], [0, 0, 0, 1, 1, 2], [0], [0]>} : vector<2x8x8xf32>, vector<2x8x128xf32>, vector<2x8x128xf32> -> vector<2x8x128xf32>
    "tpu.trace_stop"() : () -> ()
    %c0_58 = arith.constant 0 : index
    %c0_59 = arith.constant 0 : index
    %146 = vector.load %arg8[%c0_58, %c0_59] : memref<128x32xf32, #tpu.memory_space<vmem>>, vector<128x32xf32>
    %147 = vector.shape_cast %145 : vector<2x8x128xf32> to vector<16x128xf32>
    %cst_60 = arith.constant dense<0.000000e+00> : vector<16x32xf32>
    %148 = tpu.matmul %147, %146, %cst_60 {dimension_numbers = #tpu.dot_dimension_numbers<[1], [0], [0], [1], [0, 0, 1, 1], [], []>} : vector<16x128xf32>, vector<128x32xf32>, vector<16x32xf32> -> vector<16x32xf32>
    %c0_61 = arith.constant 0 : index
    %c0_62 = arith.constant 0 : index
    %149 = vector.load %arg9[%c0_61, %c0_62] : memref<1x32xf32, #tpu.memory_space<vmem>>, vector<1x32xf32>
    %150 = vector.broadcast %149 : vector<1x32xf32> to vector<16x32xf32>
    %151 = arith.addf %148, %150 : vector<16x32xf32>
    %152 = vector.shape_cast %151 : vector<16x32xf32> to vector<2x8x32xf32>
    %cst_63 = arith.constant 0.000000e+00 : f32
    %153 = vector.broadcast %cst_63 : f32 to vector<2x8x32xf32>
    %154 = arith.cmpf ogt, %152, %153 : vector<2x8x32xf32>
    %cst_64 = arith.constant 2.000000e-01 : f32
    %155 = vector.broadcast %cst_64 : f32 to vector<2x8x32xf32>
    %156 = arith.mulf %155, %152 : vector<2x8x32xf32>
    %157 = arith.select %154, %152, %156 : vector<2x8x32xi1>, vector<2x8x32xf32>
    %158 = arith.mulf %157, %157 : vector<2x8x32xf32>
    %cst_65 = arith.constant dense<0.000000e+00> : vector<2x8xf32>
    %159 = vector.multi_reduction <add>, %158, %cst_65 [2] : vector<2x8x32xf32> to vector<2x8xf32>
    %160 = vector.shape_cast %159 : vector<2x8xf32> to vector<2x8x1xf32>
    %cst_66 = arith.constant 1.000000e-24 : f32
    %161 = vector.broadcast %cst_66 : f32 to vector<2x8x1xf32>
    %162 = arith.maximumf %160, %161 : vector<2x8x1xf32>
    %163 = math.rsqrt %162 : vector<2x8x1xf32>
    %164 = vector.broadcast %163 : vector<2x8x1xf32> to vector<2x8x32xf32>
    %165 = arith.mulf %157, %164 : vector<2x8x32xf32>
    %cst_67 = arith.constant dense<0.000000e+00> : vector<8xf32>
    %166 = vector.multi_reduction <add>, %165, %cst_67 [0, 2] : vector<2x8x32xf32> to vector<8xf32>
    %167 = vector.shape_cast %166 : vector<8xf32> to vector<1x8x1xf32>
    %cst_68 = arith.constant 6.400000e+01 : f32
    %168 = vector.broadcast %cst_68 : f32 to vector<1x8x1xf32>
    %169 = arith.divf %167, %168 : vector<1x8x1xf32>
    %170 = vector.broadcast %169 : vector<1x8x1xf32> to vector<2x8x32xf32>
    %171 = arith.subf %165, %170 : vector<2x8x32xf32>
    %172 = arith.mulf %171, %171 : vector<2x8x32xf32>
    %cst_69 = arith.constant dense<0.000000e+00> : vector<8xf32>
    %173 = vector.multi_reduction <add>, %172, %cst_69 [0, 2] : vector<2x8x32xf32> to vector<8xf32>
    %174 = vector.shape_cast %173 : vector<8xf32> to vector<1x8x1xf32>
    %cst_70 = arith.constant 6.400000e+01 : f32
    %175 = vector.broadcast %cst_70 : f32 to vector<1x8x1xf32>
    %176 = arith.divf %174, %175 : vector<1x8x1xf32>
    %177 = vector.broadcast %169 : vector<1x8x1xf32> to vector<2x8x32xf32>
    %178 = arith.subf %165, %177 : vector<2x8x32xf32>
    %cst_71 = arith.constant 9.99999974E-6 : f32
    %179 = vector.broadcast %cst_71 : f32 to vector<1x8x1xf32>
    %180 = arith.addf %176, %179 : vector<1x8x1xf32>
    %181 = math.rsqrt %180 : vector<1x8x1xf32>
    %182 = vector.broadcast %181 : vector<1x8x1xf32> to vector<2x8x32xf32>
    %183 = arith.mulf %178, %182 : vector<2x8x32xf32>
    "tpu.trace_start"() <{level = 10 : i32, message = "bij,bjd->bid"}> : () -> ()
    %cst_72 = arith.constant dense<0.000000e+00> : vector<2x8x32xf32>
    %184 = tpu.matmul %144, %183, %cst_72 {dimension_numbers = #tpu.dot_dimension_numbers<[2], [1], [1], [2], [0, 0, 0, 1, 1, 2], [0], [0]>} : vector<2x8x8xf32>, vector<2x8x32xf32>, vector<2x8x32xf32> -> vector<2x8x32xf32>
    "tpu.trace_stop"() : () -> ()
    %c0_73 = arith.constant 0 : index
    %c0_74 = arith.constant 0 : index
    %185 = vector.load %arg10[%c0_73, %c0_74] : memref<32x32xf32, #tpu.memory_space<vmem>>, vector<32x32xf32>
    %186 = vector.shape_cast %184 : vector<2x8x32xf32> to vector<16x32xf32>
    %cst_75 = arith.constant dense<0.000000e+00> : vector<16x32xf32>
    %187 = tpu.matmul %186, %185, %cst_75 {dimension_numbers = #tpu.dot_dimension_numbers<[1], [0], [0], [1], [0, 0, 1, 1], [], []>} : vector<16x32xf32>, vector<32x32xf32>, vector<16x32xf32> -> vector<16x32xf32>
    %c0_76 = arith.constant 0 : index
    %c0_77 = arith.constant 0 : index
    %188 = vector.load %arg11[%c0_76, %c0_77] : memref<1x32xf32, #tpu.memory_space<vmem>>, vector<1x32xf32>
    %189 = vector.broadcast %188 : vector<1x32xf32> to vector<16x32xf32>
    %190 = arith.addf %187, %189 : vector<16x32xf32>
    %191 = vector.shape_cast %190 : vector<16x32xf32> to vector<2x8x32xf32>
    %cst_78 = arith.constant 0.000000e+00 : f32
    %192 = vector.broadcast %cst_78 : f32 to vector<2x8x32xf32>
    %193 = arith.cmpf ogt, %191, %192 : vector<2x8x32xf32>
    %cst_79 = arith.constant 2.000000e-01 : f32
    %194 = vector.broadcast %cst_79 : f32 to vector<2x8x32xf32>
    %195 = arith.mulf %194, %191 : vector<2x8x32xf32>
    %196 = arith.select %193, %191, %195 : vector<2x8x32xi1>, vector<2x8x32xf32>
    %197 = arith.mulf %196, %196 : vector<2x8x32xf32>
    %cst_80 = arith.constant dense<0.000000e+00> : vector<2x8xf32>
    %198 = vector.multi_reduction <add>, %197, %cst_80 [2] : vector<2x8x32xf32> to vector<2x8xf32>
    %199 = vector.shape_cast %198 : vector<2x8xf32> to vector<2x8x1xf32>
    %cst_81 = arith.constant 1.000000e-24 : f32
    %200 = vector.broadcast %cst_81 : f32 to vector<2x8x1xf32>
    %201 = arith.maximumf %199, %200 : vector<2x8x1xf32>
    %202 = math.rsqrt %201 : vector<2x8x1xf32>
    %203 = vector.broadcast %202 : vector<2x8x1xf32> to vector<2x8x32xf32>
    %204 = arith.mulf %196, %203 : vector<2x8x32xf32>
    %cst_82 = arith.constant dense<0.000000e+00> : vector<8xf32>
    %205 = vector.multi_reduction <add>, %204, %cst_82 [0, 2] : vector<2x8x32xf32> to vector<8xf32>
    %206 = vector.shape_cast %205 : vector<8xf32> to vector<1x8x1xf32>
    %cst_83 = arith.constant 6.400000e+01 : f32
    %207 = vector.broadcast %cst_83 : f32 to vector<1x8x1xf32>
    %208 = arith.divf %206, %207 : vector<1x8x1xf32>
    %209 = vector.broadcast %208 : vector<1x8x1xf32> to vector<2x8x32xf32>
    %210 = arith.subf %204, %209 : vector<2x8x32xf32>
    %211 = arith.mulf %210, %210 : vector<2x8x32xf32>
    %cst_84 = arith.constant dense<0.000000e+00> : vector<8xf32>
    %212 = vector.multi_reduction <add>, %211, %cst_84 [0, 2] : vector<2x8x32xf32> to vector<8xf32>
    %213 = vector.shape_cast %212 : vector<8xf32> to vector<1x8x1xf32>
    %cst_85 = arith.constant 6.400000e+01 : f32
    %214 = vector.broadcast %cst_85 : f32 to vector<1x8x1xf32>
    %215 = arith.divf %213, %214 : vector<1x8x1xf32>
    %216 = vector.broadcast %208 : vector<1x8x1xf32> to vector<2x8x32xf32>
    %217 = arith.subf %204, %216 : vector<2x8x32xf32>
    %cst_86 = arith.constant 9.99999974E-6 : f32
    %218 = vector.broadcast %cst_86 : f32 to vector<1x8x1xf32>
    %219 = arith.addf %215, %218 : vector<1x8x1xf32>
    %220 = math.rsqrt %219 : vector<1x8x1xf32>
    %221 = vector.broadcast %220 : vector<1x8x1xf32> to vector<2x8x32xf32>
    %222 = arith.mulf %217, %221 : vector<2x8x32xf32>
    %223 = arith.addf %222, %183 : vector<2x8x32xf32>
    "tpu.trace_start"() <{level = 10 : i32, message = "bij,bjd->bid"}> : () -> ()
    %cst_87 = arith.constant dense<0.000000e+00> : vector<2x8x32xf32>
    %224 = tpu.matmul %144, %223, %cst_87 {dimension_numbers = #tpu.dot_dimension_numbers<[2], [1], [1], [2], [0, 0, 0, 1, 1, 2], [0], [0]>} : vector<2x8x8xf32>, vector<2x8x32xf32>, vector<2x8x32xf32> -> vector<2x8x32xf32>
    "tpu.trace_stop"() : () -> ()
    %c0_88 = arith.constant 0 : index
    %c0_89 = arith.constant 0 : index
    %225 = vector.load %arg12[%c0_88, %c0_89] : memref<32x128xf32, #tpu.memory_space<vmem>>, vector<32x128xf32>
    %226 = vector.shape_cast %224 : vector<2x8x32xf32> to vector<16x32xf32>
    %cst_90 = arith.constant dense<0.000000e+00> : vector<16x128xf32>
    %227 = tpu.matmul %226, %225, %cst_90 {dimension_numbers = #tpu.dot_dimension_numbers<[1], [0], [0], [1], [0, 0, 1, 1], [], []>} : vector<16x32xf32>, vector<32x128xf32>, vector<16x128xf32> -> vector<16x128xf32>
    %c0_91 = arith.constant 0 : index
    %c0_92 = arith.constant 0 : index
    %228 = vector.load %arg13[%c0_91, %c0_92] : memref<1x128xf32, #tpu.memory_space<vmem>>, vector<1x128xf32>
    %229 = vector.broadcast %228 : vector<1x128xf32> to vector<16x128xf32>
    %230 = arith.addf %227, %229 : vector<16x128xf32>
    %231 = vector.shape_cast %230 : vector<16x128xf32> to vector<2x8x128xf32>
    %232 = arith.mulf %231, %231 : vector<2x8x128xf32>
    %cst_93 = arith.constant dense<0.000000e+00> : vector<2x8xf32>
    %233 = vector.multi_reduction <add>, %232, %cst_93 [2] : vector<2x8x128xf32> to vector<2x8xf32>
    %234 = vector.shape_cast %233 : vector<2x8xf32> to vector<2x8x1xf32>
    %cst_94 = arith.constant 1.000000e-24 : f32
    %235 = vector.broadcast %cst_94 : f32 to vector<2x8x1xf32>
    %236 = arith.maximumf %234, %235 : vector<2x8x1xf32>
    %237 = math.rsqrt %236 : vector<2x8x1xf32>
    %238 = vector.broadcast %237 : vector<2x8x1xf32> to vector<2x8x128xf32>
    %239 = arith.mulf %231, %238 : vector<2x8x128xf32>
    %c0_95 = arith.constant 0 : index
    %c0_96 = arith.constant 0 : index
    %c0_97 = arith.constant 0 : index
    %240 = vector.load %arg20[%c0_95, %c0_96, %c0_97] : memref<2x8x128xf32, #tpu.memory_space<vmem>>, vector<2x8x128xf32>
    tpu.vector_store %arg20[%c0_95, %c0_96, %c0_97], %239 {strides = array<i32>} : memref<2x8x128xf32, #tpu.memory_space<vmem>>, vector<2x8x128xf32>,
    %cst_98 = arith.constant dense<0xFF800000> : vector<2x128xf32>
    %241 = vector.multi_reduction <maximumf>, %239, %cst_98 [1] : vector<2x8x128xf32> to vector<2x128xf32>
    %c0_99 = arith.constant 0 : index
    %c0_100 = arith.constant 0 : index
    %242 = vector.load %arg14[%c0_99, %c0_100] : memref<128x8xf32, #tpu.memory_space<vmem>>, vector<128x8xf32>
    %cst_101 = arith.constant dense<0.000000e+00> : vector<2x8xf32>
    %243 = tpu.matmul %241, %242, %cst_101 {dimension_numbers = #tpu.dot_dimension_numbers<[1], [0], [0], [1], [0, 0, 1, 1], [], []>} : vector<2x128xf32>, vector<128x8xf32>, vector<2x8xf32> -> vector<2x8xf32>
    %c0_102 = arith.constant 0 : index
    %c0_103 = arith.constant 0 : index
    %244 = vector.load %arg15[%c0_102, %c0_103] : memref<1x8xf32, #tpu.memory_space<vmem>>, vector<1x8xf32>
    %245 = vector.broadcast %244 : vector<1x8xf32> to vector<2x8xf32>
    %246 = arith.addf %243, %245 : vector<2x8xf32>
    %cst_104 = arith.constant 0.000000e+00 : f32
    %247 = vector.broadcast %cst_104 : f32 to vector<2x8xf32>
    %248 = arith.cmpf ogt, %246, %247 : vector<2x8xf32>
    %cst_105 = arith.constant 2.000000e-01 : f32
    %249 = vector.broadcast %cst_105 : f32 to vector<2x8xf32>
    %250 = arith.mulf %249, %246 : vector<2x8xf32>
    %251 = arith.select %248, %246, %250 : vector<2x8xi1>, vector<2x8xf32>
    %c0_106 = arith.constant 0 : index
    %c0_107 = arith.constant 0 : index
    %252 = vector.load %arg16[%c0_106, %c0_107] : memref<8x128xf32, #tpu.memory_space<vmem>>, vector<8x128xf32>
    %cst_108 = arith.constant dense<0.000000e+00> : vector<2x128xf32>
    %253 = tpu.matmul %251, %252, %cst_108 {dimension_numbers = #tpu.dot_dimension_numbers<[1], [0], [0], [1], [0, 0, 1, 1], [], []>} : vector<2x8xf32>, vector<8x128xf32>, vector<2x128xf32> -> vector<2x128xf32>
    %c0_109 = arith.constant 0 : index
    %c0_110 = arith.constant 0 : index
    %254 = vector.load %arg17[%c0_109, %c0_110] : memref<1x128xf32, #tpu.memory_space<vmem>>, vector<1x128xf32>
    %255 = vector.broadcast %254 : vector<1x128xf32> to vector<2x128xf32>
    %256 = arith.addf %253, %255 : vector<2x128xf32>
    %c0_111 = arith.constant 0 : index
    %c0_112 = arith.constant 0 : index
    %257 = vector.load %arg21[%c0_111, %c0_112] : memref<2x128xf32, #tpu.memory_space<vmem>>, vector<2x128xf32>
    tpu.vector_store %arg21[%c0_111, %c0_112], %256 {strides = array<i32>} : memref<2x128xf32, #tpu.memory_space<vmem>>, vector<2x128xf32>,
    tpu.wait_dma2 semaphore(%arg23 : memref<!tpu.dma_semaphore, #tpu.memory_space<semaphore_mem>>) src(%arg22 : memref<2x8x8xf32, #tpu.memory_space<vmem>>) dst(%arg19 : memref<2x8x8xf32, #tpu.memory_space<any>>)
    return
  }
}

</mosaic_0001>

<llo_original>
// kernel: net_ge_forward.1
$region0: #{net_ge_forward.1}
  #allocation0 [shape = 'u32[]', space=smem, size = 0x4, offset = 0x4, fixed_abs, tag = 'smem constant byte address 0x4 - core index']
  #allocation1 [shape = 'u32[144,128]{1,0:T(1,128)}', space=vmem, size = 0x12000, scoped, tag = 'internal scratch']
  #allocation2 [shape = 'f32[2,8,8]{2,1,0:T(8,128)}', space=vmem, size = 0x2000, scoped, tag = 'scratch operand']
  #allocation3 [shape = 's32[1]{0}', space=sflag, size = 0x4, scoped, tag = 'scratch operand']
  #allocation9 [shape = 's32[]', space=sflag, size = 0x4, offset = 0, fixed_abs, tag = 'sflag constant byte address 0x0 - dummy sync flag']
  #allocation10 [shape = 's32[]', space=sflag, size = 0x4, offset = 0, fixed_abs, tag = 'sflag constant byte address 0x0 - dummy sync flag']
  #allocation11 [shape = 'u32[]', space=smem, size = 0x4, offset = 0x44, fixed_abs, tag = 'smem constant byte address 0x44 - assertion arg 0']
  #allocation12 [shape = 'u32[]', space=smem, size = 0x4, offset = 0x48, fixed_abs, tag = 'smem constant byte address 0x48 - assertion arg 1']
  %s0 = inlined_call_operand.vmem [shape: f32[2,8,8], index: 0, kind: input, shape index: {}]
  %s1 = inlined_call_operand.vmem [shape: f32[2,8,8], index: 1, kind: input, shape index: {}]
  %s2 = inlined_call_operand.vmem [shape: f32[8,32], index: 2, kind: input, shape index: {}]
  %s3 = inlined_call_operand.vmem [shape: f32[1,32], index: 3, kind: input, shape index: {}]
  %s4 = inlined_call_operand.vmem [shape: f32[32,32], index: 4, kind: input, shape index: {}]
  %s5 = inlined_call_operand.vmem [shape: f32[1,32], index: 5, kind: input, shape index: {}]
  %s6 = inlined_call_operand.vmem [shape: f32[32,128], index: 6, kind: input, shape index: {}]
  %s7 = inlined_call_operand.vmem [shape: f32[1,128], index: 7, kind: input, shape index: {}]
  %s8 = inlined_call_operand.vmem [shape: f32[128,32], index: 8, kind: input, shape index: {}]
  %s9 = inlined_call_operand.vmem [shape: f32[1,32], index: 9, kind: input, shape index: {}]
  %s10 = inlined_call_operand.vmem [shape: f32[32,32], index: 10, kind: input, shape index: {}]
  %s11 = inlined_call_operand.vmem [shape: f32[1,32], index: 11, kind: input, shape index: {}]
  %s12 = inlined_call_operand.vmem [shape: f32[32,128], index: 12, kind: input, shape index: {}]
  %s13 = inlined_call_operand.vmem [shape: f32[1,128], index: 13, kind: input, shape index: {}]
  %s14 = inlined_call_operand.vmem [shape: f32[128,8], index: 14, kind: input, shape index: {}]
  %s15 = inlined_call_operand.vmem [shape: f32[1,8], index: 15, kind: input, shape index: {}]
  %s16 = inlined_call_operand.vmem [shape: f32[8,128], index: 16, kind: input, shape index: {}]
  %s17 = inlined_call_operand.vmem [shape: f32[1,128], index: 17, kind: input, shape index: {}]
  %s18 = inlined_call_operand.hbm [shape: f32[2,8,128], index: 18, kind: output, shape index: {0}]
  %s19 = inlined_call_operand.hbm [shape: f32[2,8,8], index: 19, kind: output, shape index: {1}]
  %s20 = inlined_call_operand.hbm [shape: f32[2,8,128], index: 20, kind: output, shape index: {2}]
  %s21 = inlined_call_operand.hbm [shape: f32[2,128], index: 21, kind: output, shape index: {3}]
  %22 = xla_tuple %s18, %s19, %s20, %s21
  %s23 = sld [smem:[#allocation0]]
  $region102: #{net_ge_forward.1} parent=0
    _
  %s25 = ssub.s32 1, %s23
  %s26 = scalar_select 0, %s25, %s23
  $region1: #{net_ge_forward.1} parent=0
    #allocation4 [shape = 'u8[8192]{0}', space=vmem, size = 0x2000, scoped, tag = 'output window, operand 0, single buffered']
    #allocation5 [shape = 's32[1]{0}', space=sflag, size = 0x4, scoped, tag = 'scoped memory for net_ge_forward.1']
    #allocation6 [shape = 'u8[8192]{0}', space=vmem, size = 0x2000, scoped, tag = 'output window, operand 2, single buffered']
    #allocation7 [shape = 's32[1]{0}', space=sflag, size = 0x4, scoped, tag = 'scoped memory for net_ge_forward.1']
    #allocation8 [shape = 'u8[1024]{0}', space=vmem, size = 0x400, scoped, tag = 'output window, operand 3, single buffered']
    %27 = vsyncpa [#allocation5], 0
    %28 = vsyncpa [#allocation7], 0
    // Predicated region
    $region2: #{net_ge_forward.1} parent=1 // pred_check
      _
    $region3: #{net_ge_forward.1} parent=1 // pred_check_branch
      %30 = sbr.rel (0) target = $region5
    $region4: #{net_ge_forward.1} parent=1 // pred_region
      _
    $region5: #{net_ge_forward.1} parent=1 // pred_fallthru
      _
    // Predicated region
    $region6: #{net_ge_forward.1} parent=1 // pred_check
      _
    $region7: #{net_ge_forward.1} parent=1 // pred_check_branch
      %32 = sbr.rel (0) target = $region9
    $region8: #{net_ge_forward.1} parent=1 // pred_region
      _
    $region9: #{net_ge_forward.1} parent=1 // pred_fallthru
      _
    // Predicated region
    $region10: #{net_ge_forward.1} parent=1 // pred_check
      _
    $region11: #{net_ge_forward.1} parent=1 // pred_check_branch
      %34 = sbr.rel (0) target = $region13
    $region12: #{net_ge_forward.1} parent=1 // pred_region
      _
    $region13: #{net_ge_forward.1} parent=1 // pred_fallthru
      _
    // Predicated region
    $region14: #{net_ge_forward.1} parent=1 // pred_check
      _
    $region15: #{net_ge_forward.1} parent=1 // pred_check_branch
      %36 = sbr.rel (0) target = $region17
    $region16: #{net_ge_forward.1} parent=1 // pred_region
      _
    $region17: #{net_ge_forward.1} parent=1 // pred_fallthru
      _
    // Predicated region
    $region18: #{net_ge_forward.1} parent=1 // pred_check
      _
    $region19: #{net_ge_forward.1} parent=1 // pred_check_branch
      %38 = sbr.rel (0) target = $region21
    $region20: #{net_ge_forward.1} parent=1 // pred_region
      _
    $region21: #{net_ge_forward.1} parent=1 // pred_fallthru
      _
    // Predicated region
    $region22: #{net_ge_forward.1} parent=1 // pred_check
      _
    $region23: #{net_ge_forward.1} parent=1 // pred_check_branch
      %40 = sbr.rel (0) target = $region25
    $region24: #{net_ge_forward.1} parent=1 // pred_region
      _
    $region25: #{net_ge_forward.1} parent=1 // pred_fallthru
      _
    // Predicated region
    $region26: #{net_ge_forward.1} parent=1 // pred_check
      _
    $region27: #{net_ge_forward.1} parent=1 // pred_check_branch
      %42 = sbr.rel (0) target = $region29
    $region28: #{net_ge_forward.1} parent=1 // pred_region
      _
    $region29: #{net_ge_forward.1} parent=1 // pred_fallthru
      _
    // Predicated region
    $region30: #{net_ge_forward.1} parent=1 // pred_check
      _
    $region31: #{net_ge_forward.1} parent=1 // pred_check_branch
      %44 = sbr.rel (0) target = $region33
    $region32: #{net_ge_forward.1} parent=1 // pred_region
      _
    $region33: #{net_ge_forward.1} parent=1 // pred_fallthru
      _
    // Predicated region
    $region34: #{net_ge_forward.1} parent=1 // pred_check
      _
    $region35: #{net_ge_forward.1} parent=1 // pred_check_branch
      %46 = sbr.rel (0) target = $region37
    $region36: #{net_ge_forward.1} parent=1 // pred_region
      _
    $region37: #{net_ge_forward.1} parent=1 // pred_fallthru
      _
    // Predicated region
    $region38: #{net_ge_forward.1} parent=1 // pred_check
      _
    $region39: #{net_ge_forward.1} parent=1 // pred_check_branch
      %48 = sbr.rel (0) target = $region41
    $region40: #{net_ge_forward.1} parent=1 // pred_region
      _
    $region41: #{net_ge_forward.1} parent=1 // pred_fallthru
      _
    // Predicated region
    $region42: #{net_ge_forward.1} parent=1 // pred_check
      _
    $region43: #{net_ge_forward.1} parent=1 // pred_check_branch
      %50 = sbr.rel (0) target = $region45
    $region44: #{net_ge_forward.1} parent=1 // pred_region
      _
    $region45: #{net_ge_forward.1} parent=1 // pred_fallthru
      _
    // Predicated region
    $region46: #{net_ge_forward.1} parent=1 // pred_check
      _
    $region47: #{net_ge_forward.1} parent=1 // pred_check_branch
      %52 = sbr.rel (0) target = $region49
    $region48: #{net_ge_forward.1} parent=1 // pred_region
      _
    $region49: #{net_ge_forward.1} parent=1 // pred_fallthru
      _
    // Predicated region
    $region50: #{net_ge_forward.1} parent=1 // pred_check
      _
    $region51: #{net_ge_forward.1} parent=1 // pred_check_branch
      %54 = sbr.rel (0) target = $region53
    $region52: #{net_ge_forward.1} parent=1 // pred_region
      _
    $region53: #{net_ge_forward.1} parent=1 // pred_fallthru
      _
    // Predicated region
    $region54: #{net_ge_forward.1} parent=1 // pred_check
      _
    $region55: #{net_ge_forward.1} parent=1 // pred_check_branch
      %56 = sbr.rel (0) target = $region57
    $region56: #{net_ge_forward.1} parent=1 // pred_region
      _
    $region57: #{net_ge_forward.1} parent=1 // pred_fallthru
      _
    // Predicated region
    $region58: #{net_ge_forward.1} parent=1 // pred_check
      _
    $region59: #{net_ge_forward.1} parent=1 // pred_check_branch
      %58 = sbr.rel (0) target = $region61
    $region60: #{net_ge_forward.1} parent=1 // pred_region
      _
    $region61: #{net_ge_forward.1} parent=1 // pred_fallthru
      _
    // Predicated region
    $region62: #{net_ge_forward.1} parent=1 // pred_check
      _
    $region63: #{net_ge_forward.1} parent=1 // pred_check_branch
      %60 = sbr.rel (0) target = $region65
    $region64: #{net_ge_forward.1} parent=1 // pred_region
      _
    $region65: #{net_ge_forward.1} parent=1 // pred_fallthru
      _
    // Predicated region
    $region66: #{net_ge_forward.1} parent=1 // pred_check
      _
    $region67: #{net_ge_forward.1} parent=1 // pred_check_branch
      %62 = sbr.rel (0) target = $region69
    $region68: #{net_ge_forward.1} parent=1 // pred_region
      _
    $region69: #{net_ge_forward.1} parent=1 // pred_fallthru
      _
    // Predicated region
    $region70: #{net_ge_forward.1} parent=1 // pred_check
      _
    $region71: #{net_ge_forward.1} parent=1 // pred_check_branch
      %64 = sbr.rel (0) target = $region73
    $region72: #{net_ge_forward.1} parent=1 // pred_region
      _
    $region73: #{net_ge_forward.1} parent=1 // pred_fallthru
      _
    %v65 = vld [vmem:[%s0] sm:$0xff]
    %v66 = vld [vmem:[%s0 + $0x8] sm:$0xff]
    %v67 = vld [vmem:[%s1] sm:$0xff]
    %v68 = vld [vmem:[%s1 + $0x8] sm:$0xff]
    %v69 = vlaneseq
    %v70 = vshrl.u32 %v69, 7
    %v71 = vlaneseq
    %v72 = vand.u32 %v71, 127
    %vm73 = vcmp.eq.s32.totalorder %v70, %v72
    %v74 = vsel %vm73, 1, 0
    %v75 = vcvt.s32.f32 %v74
    %vm76 = vcmask 64512
    %v78 = vsel %vm76, %v65, 0
    %80 = vmatprep.subr.mxu0 0.0
    %81 = vmatpush1.xpose.msra.mxu0 %v78
    %82 = vmatprep.subr.mxu0 0.0
    %83 = vmatpush1.xpose.msra.mxu0 0.0
    %84 = vmatprep.subr.mxu0 0.0
    %85 = vmatpush1.xpose.msra.mxu0 0.0
    %86 = vmatprep.subr.mxu0 0.0
    %87 = vmatpush1.xpose.msra.mxu0 0.0
    %88 = vmatprep.subr.mxu0 0.0
    %89 = vmatpush1.xpose.msra.mxu0 0.0
    %90 = vmatprep.subr.mxu0 0.0
    %91 = vmatpush1.xpose.msra.mxu0 0.0
    %92 = vmatprep.subr.mxu0 0.0
    %93 = vmatpush1.xpose.msra.mxu0 0.0
    %94 = vmatprep.subr.mxu0 0.0
    %95 = vmatpush1.xpose.msra.mxu0 0.0
    %96 = vmatprep.subr.mxu0 0.0
    %97 = vmatpush1.xpose.msra.mxu0 0.0
    %98 = vmatprep.subr.mxu0 0.0
    %99 = vmatpush1.xpose.msra.mxu0 0.0
    %100 = vmatprep.subr.mxu0 0.0
    %101 = vmatpush1.xpose.msra.mxu0 0.0
    %102 = vmatprep.subr.mxu0 0.0
    %103 = vmatpush1.xpose.msra.mxu0 0.0
    %104 = vmatprep.subr.mxu0 0.0
    %105 = vmatpush1.xpose.msra.mxu0 0.0
    %106 = vmatprep.subr.mxu0 0.0
    %107 = vmatpush1.xpose.msra.mxu0 0.0
    %108 = vmatprep.subr.mxu0 0.0
    %109 = vmatpush1.xpose.msra.mxu0 0.0
    %110 = vmatprep.subr.mxu0 0.0
    %111 = vmatpush1.xpose.msra.mxu0 0.0
    %112 = vmatprep.subr.mxu0 0.0
    %113 = vmatpush1.xpose.msra.mxu0 0.0
    %114 = vmatprep.subr.mxu0 0.0
    %115 = vmatpush1.xpose.msra.mxu0 0.0
    %116 = vmatprep.subr.mxu0 0.0
    %117 = vmatpush1.xpose.msra.mxu0 0.0
    %118 = vmatprep.subr.mxu0 0.0
    %119 = vmatpush1.xpose.msra.mxu0 0.0
    %120 = vmatprep.subr.mxu0 0.0
    %121 = vmatpush1.xpose.msra.mxu0 0.0
    %122 = vmatprep.subr.mxu0 0.0
    %123 = vmatpush1.xpose.msra.mxu0 0.0
    %124 = vmatprep.subr.mxu0 0.0
    %125 = vmatpush1.xpose.msra.mxu0 0.0
    %126 = vmatprep.subr.mxu0 0.0
    %127 = vmatpush1.xpose.msra.mxu0 0.0
    %128 = vmatprep.subr.mxu0 0.0
    %129 = vmatpush1.xpose.msra.mxu0 0.0
    %130 = vmatprep.subr.mxu0 0.0
    %131 = vmatpush1.xpose.msra.mxu0 0.0
    %132 = vmatprep.subr.mxu0 0.0
    %133 = vmatpush1.xpose.msra.mxu0 0.0
    %134 = vmatprep.subr.mxu0 0.0
    %135 = vmatpush1.xpose.msra.mxu0 0.0
    %136 = vmatprep.subr.mxu0 0.0
    %137 = vmatpush1.xpose.msra.mxu0 0.0
    %138 = vmatprep.subr.mxu0 0.0
    %139 = vmatpush1.xpose.msra.mxu0 0.0
    %140 = vmatprep.subr.mxu0 0.0
    %141 = vmatpush1.xpose.msra.mxu0 0.0
    %142 = vmatprep.subr.mxu0 0.0
    %143 = vmatpush1.xpose.msra.mxu0 0.0
    %144 = vmatprep.mubr.f32.mxu0 0.0
    %145 = vmatmul.mubr.f32.gmra.mrb[0].mxu0 %v78
    %v146 = vpop.f32.mrb[0].mxu0
    %v147 = vadd.f32 0.0, %v146
    %v148 = vpop.f32.mrb[0].mxu0
    %149 = vdwg.mxu0
    %v151 = vsel %vm76, %v66, 0
    %153 = vmatprep.subr.mxu0 0.0
    %154 = vmatpush1.xpose.msra.mxu0 %v151
    %155 = vmatprep.subr.mxu0 0.0
    %156 = vmatpush1.xpose.msra.mxu0 0.0
    %157 = vmatprep.subr.mxu0 0.0
    %158 = vmatpush1.xpose.msra.mxu0 0.0
    %159 = vmatprep.subr.mxu0 0.0
    %160 = vmatpush1.xpose.msra.mxu0 0.0
    %161 = vmatprep.subr.mxu0 0.0
    %162 = vmatpush1.xpose.msra.mxu0 0.0
    %163 = vmatprep.subr.mxu0 0.0
    %164 = vmatpush1.xpose.msra.mxu0 0.0
    %165 = vmatprep.subr.mxu0 0.0
    %166 = vmatpush1.xpose.msra.mxu0 0.0
    %167 = vmatprep.subr.mxu0 0.0
    %168 = vmatpush1.xpose.msra.mxu0 0.0
    %169 = vmatprep.subr.mxu0 0.0
    %170 = vmatpush1.xpose.msra.mxu0 0.0
    %171 = vmatprep.subr.mxu0 0.0
    %172 = vmatpush1.xpose.msra.mxu0 0.0
    %173 = vmatprep.subr.mxu0 0.0
    %174 = vmatpush1.xpose.msra.mxu0 0.0
    %175 = vmatprep.subr.mxu0 0.0
    %176 = vmatpush1.xpose.msra.mxu0 0.0
    %177 = vmatprep.subr.mxu0 0.0
    %178 = vmatpush1.xpose.msra.mxu0 0.0
    %179 = vmatprep.subr.mxu0 0.0
    %180 = vmatpush1.xpose.msra.mxu0 0.0
    %181 = vmatprep.subr.mxu0 0.0
    %182 = vmatpush1.xpose.msra.mxu0 0.0
    %183 = vmatprep.subr.mxu0 0.0
    %184 = vmatpush1.xpose.msra.mxu0 0.0
    %185 = vmatprep.subr.mxu0 0.0
    %186 = vmatpush1.xpose.msra.mxu0 0.0
    %187 = vmatprep.subr.mxu0 0.0
    %188 = vmatpush1.xpose.msra.mxu0 0.0
    %189 = vmatprep.subr.mxu0 0.0
    %190 = vmatpush1.xpose.msra.mxu0 0.0
    %191 = vmatprep.subr.mxu0 0.0
    %192 = vmatpush1.xpose.msra.mxu0 0.0
    %193 = vmatprep.subr.mxu0 0.0
    %194 = vmatpush1.xpose.msra.mxu0 0.0
    %195 = vmatprep.subr.mxu0 0.0
    %196 = vmatpush1.xpose.msra.mxu0 0.0
    %197 = vmatprep.subr.mxu0 0.0
    %198 = vmatpush1.xpose.msra.mxu0 0.0
    %199 = vmatprep.subr.mxu0 0.0
    %200 = vmatpush1.xpose.msra.mxu0 0.0
    %201 = vmatprep.subr.mxu0 0.0
    %202 = vmatpush1.xpose.msra.mxu0 0.0
    %203 = vmatprep.subr.mxu0 0.0
    %204 = vmatpush1.xpose.msra.mxu0 0.0
    %205 = vmatprep.subr.mxu0 0.0
    %206 = vmatpush1.xpose.msra.mxu0 0.0
    %207 = vmatprep.subr.mxu0 0.0
    %208 = vmatpush1.xpose.msra.mxu0 0.0
    %209 = vmatprep.subr.mxu0 0.0
    %210 = vmatpush1.xpose.msra.mxu0 0.0
    %211 = vmatprep.subr.mxu0 0.0
    %212 = vmatpush1.xpose.msra.mxu0 0.0
    %213 = vmatprep.subr.mxu0 0.0
    %214 = vmatpush1.xpose.msra.mxu0 0.0
    %215 = vmatprep.subr.mxu0 0.0
    %216 = vmatpush1.xpose.msra.mxu0 0.0
    %217 = vmatprep.mubr.f32.mxu0 0.0
    %218 = vmatmul.mubr.f32.gmra.mrb[0].mxu0 %v151
    %v219 = vpop.f32.mrb[0].mxu0
    %v220 = vadd.f32 0.0, %v219
    %v221 = vpop.f32.mrb[0].mxu0
    %222 = vdwg.mxu0
    %v223 = vxor.u32 %v147, 2147483648
    %v224 = vxor.u32 %v220, 2147483648
    %v225 = vmul.f32 %v223, 1.442695
    %v226 = vpow.pop %v225
    %v227 = vmul.f32 %v224, 1.442695
    %v228 = vpow.pop %v227
    %v229 = vadd.f32 %v226, 1.0
    %v230 = vadd.f32 %v228, 1.0
    %v231 = vrcp.pop %v229
    %v232 = vmul.f32 1.0, %v231
    %v233 = vrcp.pop %v230
    %v234 = vmul.f32 1.0, %v233
    %235 = vst.msk [vmem:[#allocation2] sm:$0xff] %vm76, %v232
    %236 = vst.msk [vmem:[#allocation2 + $0x8] sm:$0xff] %vm76, %v234
    // Predicated region
    $region74: #{net_ge_forward.1} parent=1 // pred_check
      _
    $region75: #{net_ge_forward.1} parent=1 // pred_check_branch
      %238 = sbr.rel target = $region77
    $region76: #{net_ge_forward.1} parent=1 // pred_region
      %239 = sst [smem:[#allocation11]] [#allocation10]
      %240 = sst [smem:[#allocation12]] [#allocation9]
    $region77: #{net_ge_forward.1} parent=1 // pred_fallthru
      _
    %242 = shalt.err (0)
    %s244 = sshll.u32 [#allocation2], 4
    %s245 = int_to_ptr.vmem [resolvable:$true] %s244
    %247 = dma.vmem_to_hbm [thread:$0]  %s245, 256, %s19, [#allocation3]
    %v248 = vmax.f32 %v67, 0.0
    %v249 = vmax.f32 %v68, 0.0
    %v250 = vadd.f32 %v248, %v75
    %v251 = vadd.f32 %v249, %v75
    %v252 = vsel %vm76, %v250, 0.0
    %253 = vadd.xlane.f32.xlu0 %v252
    %v254 = vpop.xlane.xlu0 %253
    %v255 = vsel %vm76, %v251, 0.0
    %256 = vadd.xlane.f32.xlu0 %v255
    %v257 = vpop.xlane.xlu0 %256
    %v258 = vadd.f32 %v254, 1e-05
    %v259 = vadd.f32 %v257, 1e-05
    %v260 = vrsqrt.pop %v258
    %v261 = vrsqrt.pop %v259
    %v262 = vmul.f32 %v260, %v75
    %v263 = vmul.f32 %v261, %v75
    %v264 = vsel %vm76, %v262, 0.0
    %v265 = vrot.slane %v264, 4
    %v266 = vadd.f32 %v264, %v265
    %v267 = vrot.slane %v266, 2
    %v268 = vadd.f32 %v266, %v267
    %v269 = vrot.slane %v268, 1
    %v270 = vadd.f32 %v268, %v269
    %v271 = vsel %vm76, %v263, 0.0
    %v272 = vrot.slane %v271, 4
    %v273 = vadd.f32 %v271, %v272
    %v274 = vrot.slane %v273, 2
    %v275 = vadd.f32 %v273, %v274
    %v276 = vrot.slane %v275, 1
    %v277 = vadd.f32 %v275, %v276
    %v278 = vmul.f32 %v250, %v260
    %v279 = vmul.f32 %v251, %v261
    %v280 = vmul.f32 %v278, %v270
    %v281 = vmul.f32 %v279, %v277
    %v283 = vsel %vm76, %v280, 0
    %285 = vmatprep.subr.mxu0 0.0
    %286 = vmatpush1.msra.mxu0 %v65
    %287 = vmatprep.subr.mxu0 0.0
    %288 = vmatpush1.msra.mxu0 0.0
    %289 = vmatprep.subr.mxu0 0.0
    %290 = vmatpush1.msra.mxu0 0.0
    %291 = vmatprep.subr.mxu0 0.0
    %292 = vmatpush1.msra.mxu0 0.0
    %293 = vmatprep.subr.mxu0 0.0
    %294 = vmatpush1.msra.mxu0 0.0
    %295 = vmatprep.subr.mxu0 0.0
    %296 = vmatpush1.msra.mxu0 0.0
    %297 = vmatprep.subr.mxu0 0.0
    %298 = vmatpush1.msra.mxu0 0.0
    %299 = vmatprep.subr.mxu0 0.0
    %300 = vmatpush1.msra.mxu0 0.0
    %301 = vmatprep.subr.mxu0 0.0
    %302 = vmatpush1.msra.mxu0 0.0
    %303 = vmatprep.subr.mxu0 0.0
    %304 = vmatpush1.msra.mxu0 0.0
    %305 = vmatprep.subr.mxu0 0.0
    %306 = vmatpush1.msra.mxu0 0.0
    %307 = vmatprep.subr.mxu0 0.0
    %308 = vmatpush1.msra.mxu0 0.0
    %309 = vmatprep.subr.mxu0 0.0
    %310 = vmatpush1.msra.mxu0 0.0
    %311 = vmatprep.subr.mxu0 0.0
    %312 = vmatpush1.msra.mxu0 0.0
    %313 = vmatprep.subr.mxu0 0.0
    %314 = vmatpush1.msra.mxu0 0.0
    %315 = vmatprep.subr.mxu0 0.0
    %316 = vmatpush1.msra.mxu0 0.0
    %317 = vmatprep.subr.mxu0 0.0
    %318 = vmatpush1.msra.mxu0 0.0
    %319 = vmatprep.subr.mxu0 0.0
    %320 = vmatpush1.msra.mxu0 0.0
    %321 = vmatprep.subr.mxu0 0.0
    %322 = vmatpush1.msra.mxu0 0.0
    %323 = vmatprep.subr.mxu0 0.0
    %324 = vmatpush1.msra.mxu0 0.0
    %325 = vmatprep.subr.mxu0 0.0
    %326 = vmatpush1.msra.mxu0 0.0
    %327 = vmatprep.subr.mxu0 0.0
    %328 = vmatpush1.msra.mxu0 0.0
    %329 = vmatprep.subr.mxu0 0.0
    %330 = vmatpush1.msra.mxu0 0.0
    %331 = vmatprep.subr.mxu0 0.0
    %332 = vmatpush1.msra.mxu0 0.0
    %333 = vmatprep.subr.mxu0 0.0
    %334 = vmatpush1.msra.mxu0 0.0
    %335 = vmatprep.subr.mxu0 0.0
    %336 = vmatpush1.msra.mxu0 0.0
    %337 = vmatprep.subr.mxu0 0.0
    %338 = vmatpush1.msra.mxu0 0.0
    %339 = vmatprep.subr.mxu0 0.0
    %340 = vmatpush1.msra.mxu0 0.0
    %341 = vmatprep.subr.mxu0 0.0
    %342 = vmatpush1.msra.mxu0 0.0
    %343 = vmatprep.subr.mxu0 0.0
    %344 = vmatpush1.msra.mxu0 0.0
    %345 = vmatprep.subr.mxu0 0.0
    %346 = vmatpush1.msra.mxu0 0.0
    %347 = vmatprep.subr.mxu0 0.0
    %348 = vmatpush1.msra.mxu0 0.0
    %349 = vmatprep.mubr.f32.mxu0 0.0
    %350 = vmatmul.mubr.f32.gmra.mrb[0].mxu0 %v283
    %v351 = vpop.f32.mrb[0].mxu0
    %v352 = vadd.f32 0.0, %v351
    %v353 = vpop.f32.mrb[0].mxu0
    %354 = vdwg.mxu0
    %v356 = vsel %vm76, %v281, 0
    %358 = vmatprep.subr.mxu0 0.0
    %359 = vmatpush1.msra.mxu0 %v66
    %360 = vmatprep.subr.mxu0 0.0
    %361 = vmatpush1.msra.mxu0 0.0
    %362 = vmatprep.subr.mxu0 0.0
    %363 = vmatpush1.msra.mxu0 0.0
    %364 = vmatprep.subr.mxu0 0.0
    %365 = vmatpush1.msra.mxu0 0.0
    %366 = vmatprep.subr.mxu0 0.0
    %367 = vmatpush1.msra.mxu0 0.0
    %368 = vmatprep.subr.mxu0 0.0
    %369 = vmatpush1.msra.mxu0 0.0
    %370 = vmatprep.subr.mxu0 0.0
    %371 = vmatpush1.msra.mxu0 0.0
    %372 = vmatprep.subr.mxu0 0.0
    %373 = vmatpush1.msra.mxu0 0.0
    %374 = vmatprep.subr.mxu0 0.0
    %375 = vmatpush1.msra.mxu0 0.0
    %376 = vmatprep.subr.mxu0 0.0
    %377 = vmatpush1.msra.mxu0 0.0
    %378 = vmatprep.subr.mxu0 0.0
    %379 = vmatpush1.msra.mxu0 0.0
    %380 = vmatprep.subr.mxu0 0.0
    %381 = vmatpush1.msra.mxu0 0.0
    %382 = vmatprep.subr.mxu0 0.0
    %383 = vmatpush1.msra.mxu0 0.0
    %384 = vmatprep.subr.mxu0 0.0
    %385 = vmatpush1.msra.mxu0 0.0
    %386 = vmatprep.subr.mxu0 0.0
    %387 = vmatpush1.msra.mxu0 0.0
    %388 = vmatprep.subr.mxu0 0.0
    %389 = vmatpush1.msra.mxu0 0.0
    %390 = vmatprep.subr.mxu0 0.0
    %391 = vmatpush1.msra.mxu0 0.0
    %392 = vmatprep.subr.mxu0 0.0
    %393 = vmatpush1.msra.mxu0 0.0
    %394 = vmatprep.subr.mxu0 0.0
    %395 = vmatpush1.msra.mxu0 0.0
    %396 = vmatprep.subr.mxu0 0.0
    %397 = vmatpush1.msra.mxu0 0.0
    %398 = vmatprep.subr.mxu0 0.0
    %399 = vmatpush1.msra.mxu0 0.0
    %400 = vmatprep.subr.mxu0 0.0
    %401 = vmatpush1.msra.mxu0 0.0
    %402 = vmatprep.subr.mxu0 0.0
    %403 = vmatpush1.msra.mxu0 0.0
    %404 = vmatprep.subr.mxu0 0.0
    %405 = vmatpush1.msra.mxu0 0.0
    %406 = vmatprep.subr.mxu0 0.0
    %407 = vmatpush1.msra.mxu0 0.0
    %408 = vmatprep.subr.mxu0 0.0
    %409 = vmatpush1.msra.mxu0 0.0
    %410 = vmatprep.subr.mxu0 0.0
    %411 = vmatpush1.msra.mxu0 0.0
    %412 = vmatprep.subr.mxu0 0.0
    %413 = vmatpush1.msra.mxu0 0.0
    %414 = vmatprep.subr.mxu0 0.0
    %415 = vmatpush1.msra.mxu0 0.0
    %416 = vmatprep.subr.mxu0 0.0
    %417 = vmatpush1.msra.mxu0 0.0
    %418 = vmatprep.subr.mxu0 0.0
    %419 = vmatpush1.msra.mxu0 0.0
    %420 = vmatprep.subr.mxu0 0.0
    %421 = vmatpush1.msra.mxu0 0.0
    %422 = vmatprep.mubr.f32.mxu0 0.0
    %423 = vmatmul.mubr.f32.gmra.mrb[0].mxu0 %v356
    %v424 = vpop.f32.mrb[0].mxu0
    %v425 = vadd.f32 0.0, %v424
    %v426 = vpop.f32.mrb[0].mxu0
    %427 = vdwg.mxu0
    %v428 = vld [vmem:[%s2] sm:$0xff]
    %v429 = vld [vmem:[%s3] sm:$0x1]
    %v431 = vlaneseq
    %v432 = vshrl.u32 %v431, 7
    %v433 = vsub.s32 0, %v432
    %v434 = vrot.slane %v429, %v433
    %v437 = vsel %vm76, %v352, 0
    %v440 = vsel %vm76, %v425, 0
    %442 = vmatprep.subr.mxu0 0.0
    %443 = vmatpush1.msra.mxu0 %v428
    %444 = vmatprep.subr.mxu0 0.0
    %445 = vmatpush1.msra.mxu0 0.0
    %446 = vmatprep.subr.mxu0 0.0
    %447 = vmatpush1.msra.mxu0 0.0
    %448 = vmatprep.subr.mxu0 0.0
    %449 = vmatpush1.msra.mxu0 0.0
    %450 = vmatprep.subr.mxu0 0.0
    %451 = vmatpush1.msra.mxu0 0.0
    %452 = vmatprep.subr.mxu0 0.0
    %453 = vmatpush1.msra.mxu0 0.0
    %454 = vmatprep.subr.mxu0 0.0
    %455 = vmatpush1.msra.mxu0 0.0
    %456 = vmatprep.subr.mxu0 0.0
    %457 = vmatpush1.msra.mxu0 0.0
    %458 = vmatprep.subr.mxu0 0.0
    %459 = vmatpush1.msra.mxu0 0.0
    %460 = vmatprep.subr.mxu0 0.0
    %461 = vmatpush1.msra.mxu0 0.0
    %462 = vmatprep.subr.mxu0 0.0
    %463 = vmatpush1.msra.mxu0 0.0
    %464 = vmatprep.subr.mxu0 0.0
    %465 = vmatpush1.msra.mxu0 0.0
    %466 = vmatprep.subr.mxu0 0.0
    %467 = vmatpush1.msra.mxu0 0.0
    %468 = vmatprep.subr.mxu0 0.0
    %469 = vmatpush1.msra.mxu0 0.0
    %470 = vmatprep.subr.mxu0 0.0
    %471 = vmatpush1.msra.mxu0 0.0
    %472 = vmatprep.subr.mxu0 0.0
    %473 = vmatpush1.msra.mxu0 0.0
    %474 = vmatprep.subr.mxu0 0.0
    %475 = vmatpush1.msra.mxu0 0.0
    %476 = vmatprep.subr.mxu0 0.0
    %477 = vmatpush1.msra.mxu0 0.0
    %478 = vmatprep.subr.mxu0 0.0
    %479 = vmatpush1.msra.mxu0 0.0
    %480 = vmatprep.subr.mxu0 0.0
    %481 = vmatpush1.msra.mxu0 0.0
    %482 = vmatprep.subr.mxu0 0.0
    %483 = vmatpush1.msra.mxu0 0.0
    %484 = vmatprep.subr.mxu0 0.0
    %485 = vmatpush1.msra.mxu0 0.0
    %486 = vmatprep.subr.mxu0 0.0
    %487 = vmatpush1.msra.mxu0 0.0
    %488 = vmatprep.subr.mxu0 0.0
    %489 = vmatpush1.msra.mxu0 0.0
    %490 = vmatprep.subr.mxu0 0.0
    %491 = vmatpush1.msra.mxu0 0.0
    %492 = vmatprep.subr.mxu0 0.0
    %493 = vmatpush1.msra.mxu0 0.0
    %494 = vmatprep.subr.mxu0 0.0
    %495 = vmatpush1.msra.mxu0 0.0
    %496 = vmatprep.subr.mxu0 0.0
    %497 = vmatpush1.msra.mxu0 0.0
    %498 = vmatprep.subr.mxu0 0.0
    %499 = vmatpush1.msra.mxu0 0.0
    %500 = vmatprep.subr.mxu0 0.0
    %501 = vmatpush1.msra.mxu0 0.0
    %502 = vmatprep.subr.mxu0 0.0
    %503 = vmatpush1.msra.mxu0 0.0
    %504 = vmatprep.subr.mxu0 0.0
    %505 = vmatpush1.msra.mxu0 0.0
    %506 = vmatprep.mubr.f32.mxu0 0.0
    %507 = vmatmul.mubr.f32.gmra.mrb[0].mxu0 %v437
    %v508 = vpop.f32.mrb[0].mxu0
    %v509 = vadd.f32 %v434, %v508
    %v510 = vpop.f32.mrb[0].mxu0
    %511 = vmatprep.mubr.f32.mxu0 0.0
    %512 = vmatmul.mubr.f32.gmra.mrb[0].mxu0 %v440
    %v513 = vpop.f32.mrb[0].mxu0
    %v514 = vadd.f32 %v434, %v513
    %v515 = vpop.f32.mrb[0].mxu0
    %516 = vdwg.mxu0
    %vm517 = vcmp.gt.f32.partialorder %v509, 0.0
    %vm518 = vcmp.gt.f32.partialorder %v514, 0.0
    %v519 = vmul.f32 %v509, 0.2
    %v520 = vmul.f32 %v514, 0.2
    %v521 = vsel %vm517, %v509, %v519
    %v522 = vsel %vm518, %v514, %v520
    %v523 = vmul.f32 %v521, %v521
    %v524 = vmul.f32 %v522, %v522
    %vm525 = vcmask 261120
    %v526 = vsel %vm525, %v523, 0.0
    %527 = vadd.xlane.f32.xlu0 %v526
    %v528 = vpop.xlane.xlu0 %527
    %v529 = vsel %vm525, %v524, 0.0
    %530 = vadd.xlane.f32.xlu0 %v529
    %v531 = vpop.xlane.xlu0 %530
    %v532 = vmax.f32 %v528, 1e-24
    %v533 = vmax.f32 %v531, 1e-24
    %v534 = vrsqrt.pop %v532
    %v535 = vrsqrt.pop %v533
    %v536 = vmul.f32 %v521, %v534
    %v537 = vmul.f32 %v522, %v535
    %v538 = vsel %vm525, %v536, 0.0
    %v539 = vsel %vm525, %v537, 0.0
    %v540 = vadd.f32 %v538, %v539
    %541 = vadd.xlane.f32.xlu0 %v540
    %v542 = vpop.xlane.xlu0 %541
    %v543 = vrcp.pop 64.0
    %v544 = vmul.f32 %v542, %v543
    %v545 = vsub.f32 %v536, %v544
    %v546 = vsub.f32 %v537, %v544
    %v547 = vmul.f32 %v545, %v545
    %v548 = vmul.f32 %v546, %v546
    %v549 = vsel %vm525, %v547, 0.0
    %v550 = vsel %vm525, %v548, 0.0
    %v551 = vadd.f32 %v549, %v550
    %552 = vadd.xlane.f32.xlu0 %v551
    %v553 = vpop.xlane.xlu0 %552
    %v554 = vmul.f32 %v553, %v543
    %v555 = vadd.f32 %v554, 1e-05
    %v556 = vrsqrt.pop %v555
    %v557 = vmul.f32 %v545, %v556
    %v558 = vmul.f32 %v546, %v556
    %559 = vmatprep.subr.mxu0 0.0
    %560 = vmatpush1.msra.mxu0 %v557
    %561 = vmatprep.subr.mxu0 0.0
    %562 = vmatpush1.msra.mxu0 0.0
    %563 = vmatprep.subr.mxu0 0.0
    %564 = vmatpush1.msra.mxu0 0.0
    %565 = vmatprep.subr.mxu0 0.0
    %566 = vmatpush1.msra.mxu0 0.0
    %567 = vmatprep.subr.mxu0 0.0
    %568 = vmatpush1.msra.mxu0 0.0
    %569 = vmatprep.subr.mxu0 0.0
    %570 = vmatpush1.msra.mxu0 0.0
    %571 = vmatprep.subr.mxu0 0.0
    %572 = vmatpush1.msra.mxu0 0.0
    %573 = vmatprep.subr.mxu0 0.0
    %574 = vmatpush1.msra.mxu0 0.0
    %575 = vmatprep.subr.mxu0 0.0
    %576 = vmatpush1.msra.mxu0 0.0
    %577 = vmatprep.subr.mxu0 0.0
    %578 = vmatpush1.msra.mxu0 0.0
    %579 = vmatprep.subr.mxu0 0.0
    %580 = vmatpush1.msra.mxu0 0.0
    %581 = vmatprep.subr.mxu0 0.0
    %582 = vmatpush1.msra.mxu0 0.0
    %583 = vmatprep.subr.mxu0 0.0
    %584 = vmatpush1.msra.mxu0 0.0
    %585 = vmatprep.subr.mxu0 0.0
    %586 = vmatpush1.msra.mxu0 0.0
    %587 = vmatprep.subr.mxu0 0.0
    %588 = vmatpush1.msra.mxu0 0.0
    %589 = vmatprep.subr.mxu0 0.0
    %590 = vmatpush1.msra.mxu0 0.0
    %591 = vmatprep.subr.mxu0 0.0
    %592 = vmatpush1.msra.mxu0 0.0
    %593 = vmatprep.subr.mxu0 0.0
    %594 = vmatpush1.msra.mxu0 0.0
    %595 = vmatprep.subr.mxu0 0.0
    %596 = vmatpush1.msra.mxu0 0.0
    %597 = vmatprep.subr.mxu0 0.0
    %598 = vmatpush1.msra.mxu0 0.0
    %599 = vmatprep.subr.mxu0 0.0
    %600 = vmatpush1.msra.mxu0 0.0
    %601 = vmatprep.subr.mxu0 0.0
    %602 = vmatpush1.msra.mxu0 0.0
    %603 = vmatprep.subr.mxu0 0.0
    %604 = vmatpush1.msra.mxu0 0.0
    %605 = vmatprep.subr.mxu0 0.0
    %606 = vmatpush1.msra.mxu0 0.0
    %607 = vmatprep.subr.mxu0 0.0
    %608 = vmatpush1.msra.mxu0 0.0
    %609 = vmatprep.subr.mxu0 0.0
    %610 = vmatpush1.msra.mxu0 0.0
    %611 = vmatprep.subr.mxu0 0.0
    %612 = vmatpush1.msra.mxu0 0.0
    %613 = vmatprep.subr.mxu0 0.0
    %614 = vmatpush1.msra.mxu0 0.0
    %615 = vmatprep.subr.mxu0 0.0
    %616 = vmatpush1.msra.mxu0 0.0
    %617 = vmatprep.subr.mxu0 0.0
    %618 = vmatpush1.msra.mxu0 0.0
    %619 = vmatprep.subr.mxu0 0.0
    %620 = vmatpush1.msra.mxu0 0.0
    %621 = vmatprep.subr.mxu0 0.0
    %622 = vmatpush1.msra.mxu0 0.0
    %623 = vmatprep.mubr.f32.mxu0 0.0
    %624 = vmatmul.mubr.f32.gmra.mrb[0].mxu0 %v283
    %v625 = vpop.f32.mrb[0].mxu0
    %v626 = vadd.f32 0.0, %v625
    %v627 = vpop.f32.mrb[0].mxu0
    %628 = vdwg.mxu0
    %629 = vmatprep.subr.mxu0 0.0
    %630 = vmatpush1.msra.mxu0 %v558
    %631 = vmatprep.subr.mxu0 0.0
    %632 = vmatpush1.msra.mxu0 0.0
    %633 = vmatprep.subr.mxu0 0.0
    %634 = vmatpush1.msra.mxu0 0.0
    %635 = vmatprep.subr.mxu0 0.0
    %636 = vmatpush1.msra.mxu0 0.0
    %637 = vmatprep.subr.mxu0 0.0
    %638 = vmatpush1.msra.mxu0 0.0
    %639 = vmatprep.subr.mxu0 0.0
    %640 = vmatpush1.msra.mxu0 0.0
    %641 = vmatprep.subr.mxu0 0.0
    %642 = vmatpush1.msra.mxu0 0.0
    %643 = vmatprep.subr.mxu0 0.0
    %644 = vmatpush1.msra.mxu0 0.0
    %645 = vmatprep.subr.mxu0 0.0
    %646 = vmatpush1.msra.mxu0 0.0
    %647 = vmatprep.subr.mxu0 0.0
    %648 = vmatpush1.msra.mxu0 0.0
    %649 = vmatprep.subr.mxu0 0.0
    %650 = vmatpush1.msra.mxu0 0.0
    %651 = vmatprep.subr.mxu0 0.0
    %652 = vmatpush1.msra.mxu0 0.0
    %653 = vmatprep.subr.mxu0 0.0
    %654 = vmatpush1.msra.mxu0 0.0
    %655 = vmatprep.subr.mxu0 0.0
    %656 = vmatpush1.msra.mxu0 0.0
    %657 = vmatprep.subr.mxu0 0.0
    %658 = vmatpush1.msra.mxu0 0.0
    %659 = vmatprep.subr.mxu0 0.0
    %660 = vmatpush1.msra.mxu0 0.0
    %661 = vmatprep.subr.mxu0 0.0
    %662 = vmatpush1.msra.mxu0 0.0
    %663 = vmatprep.subr.mxu0 0.0
    %664 = vmatpush1.msra.mxu0 0.0
    %665 = vmatprep.subr.mxu0 0.0
    %666 = vmatpush1.msra.mxu0 0.0
    %667 = vmatprep.subr.mxu0 0.0
    %668 = vmatpush1.msra.mxu0 0.0
    %669 = vmatprep.subr.mxu0 0.0
    %670 = vmatpush1.msra.mxu0 0.0
    %671 = vmatprep.subr.mxu0 0.0
    %672 = vmatpush1.msra.mxu0 0.0
    %673 = vmatprep.subr.mxu0 0.0
    %674 = vmatpush1.msra.mxu0 0.0
    %675 = vmatprep.subr.mxu0 0.0
    %676 = vmatpush1.msra.mxu0 0.0
    %677 = vmatprep.subr.mxu0 0.0
    %678 = vmatpush1.msra.mxu0 0.0
    %679 = vmatprep.subr.mxu0 0.0
    %680 = vmatpush1.msra.mxu0 0.0
    %681 = vmatprep.subr.mxu0 0.0
    %682 = vmatpush1.msra.mxu0 0.0
    %683 = vmatprep.subr.mxu0 0.0
    %684 = vmatpush1.msra.mxu0 0.0
    %685 = vmatprep.subr.mxu0 0.0
    %686 = vmatpush1.msra.mxu0 0.0
    %687 = vmatprep.subr.mxu0 0.0
    %688 = vmatpush1.msra.mxu0 0.0
    %689 = vmatprep.subr.mxu0 0.0
    %690 = vmatpush1.msra.mxu0 0.0
    %691 = vmatprep.subr.mxu0 0.0
    %692 = vmatpush1.msra.mxu0 0.0
    %693 = vmatprep.mubr.f32.mxu0 0.0
    %694 = vmatmul.mubr.f32.gmra.mrb[0].mxu0 %v356
    %v695 = vpop.f32.mrb[0].mxu0
    %v696 = vadd.f32 0.0, %v695
    %v697 = vpop.f32.mrb[0].mxu0
    %698 = vdwg.mxu0
    %v699 = vld [vmem:[%s4] sm:$0xff]
    %v700 = vld [vmem:[%s4 + $0x8] sm:$0xff]
    %v701 = vld [vmem:[%s4 + $0x10] sm:$0xff]
    %v702 = vld [vmem:[%s4 + $0x18] sm:$0xff]
    %v703 = vld [vmem:[%s5] sm:$0x1]
    %v705 = vlaneseq
    %v706 = vshrl.u32 %v705, 7
    %v707 = vsub.s32 0, %v706
    %v708 = vrot.slane %v703, %v707
    %v711 = vsel %vm525, %v626, 0
    %v714 = vsel %vm525, %v696, 0
    %716 = vmatprep.subr.mxu0 0.0
    %717 = vmatpush1.msra.mxu0 %v699
    %718 = vmatprep.subr.mxu0 0.0
    %719 = vmatpush1.msra.mxu0 %v700
    %720 = vmatprep.subr.mxu0 0.0
    %721 = vmatpush1.msra.mxu0 %v701
    %722 = vmatprep.subr.mxu0 0.0
    %723 = vmatpush1.msra.mxu0 %v702
    %724 = vmatprep.subr.mxu0 0.0
    %725 = vmatpush1.msra.mxu0 0.0
    %726 = vmatprep.subr.mxu0 0.0
    %727 = vmatpush1.msra.mxu0 0.0
    %728 = vmatprep.subr.mxu0 0.0
    %729 = vmatpush1.msra.mxu0 0.0
    %730 = vmatprep.subr.mxu0 0.0
    %731 = vmatpush1.msra.mxu0 0.0
    %732 = vmatprep.subr.mxu0 0.0
    %733 = vmatpush1.msra.mxu0 0.0
    %734 = vmatprep.subr.mxu0 0.0
    %735 = vmatpush1.msra.mxu0 0.0
    %736 = vmatprep.subr.mxu0 0.0
    %737 = vmatpush1.msra.mxu0 0.0
    %738 = vmatprep.subr.mxu0 0.0
    %739 = vmatpush1.msra.mxu0 0.0
    %740 = vmatprep.subr.mxu0 0.0
    %741 = vmatpush1.msra.mxu0 0.0
    %742 = vmatprep.subr.mxu0 0.0
    %743 = vmatpush1.msra.mxu0 0.0
    %744 = vmatprep.subr.mxu0 0.0
    %745 = vmatpush1.msra.mxu0 0.0
    %746 = vmatprep.subr.mxu0 0.0
    %747 = vmatpush1.msra.mxu0 0.0
    %748 = vmatprep.subr.mxu0 0.0
    %749 = vmatpush1.msra.mxu0 0.0
    %750 = vmatprep.subr.mxu0 0.0
    %751 = vmatpush1.msra.mxu0 0.0
    %752 = vmatprep.subr.mxu0 0.0
    %753 = vmatpush1.msra.mxu0 0.0
    %754 = vmatprep.subr.mxu0 0.0
    %755 = vmatpush1.msra.mxu0 0.0
    %756 = vmatprep.subr.mxu0 0.0
    %757 = vmatpush1.msra.mxu0 0.0
    %758 = vmatprep.subr.mxu0 0.0
    %759 = vmatpush1.msra.mxu0 0.0
    %760 = vmatprep.subr.mxu0 0.0
    %761 = vmatpush1.msra.mxu0 0.0
    %762 = vmatprep.subr.mxu0 0.0
    %763 = vmatpush1.msra.mxu0 0.0
    %764 = vmatprep.subr.mxu0 0.0
    %765 = vmatpush1.msra.mxu0 0.0
    %766 = vmatprep.subr.mxu0 0.0
    %767 = vmatpush1.msra.mxu0 0.0
    %768 = vmatprep.subr.mxu0 0.0
    %769 = vmatpush1.msra.mxu0 0.0
    %770 = vmatprep.subr.mxu0 0.0
    %771 = vmatpush1.msra.mxu0 0.0
    %772 = vmatprep.subr.mxu0 0.0
    %773 = vmatpush1.msra.mxu0 0.0
    %774 = vmatprep.subr.mxu0 0.0
    %775 = vmatpush1.msra.mxu0 0.0
    %776 = vmatprep.subr.mxu0 0.0
    %777 = vmatpush1.msra.mxu0 0.0
    %778 = vmatprep.subr.mxu0 0.0
    %779 = vmatpush1.msra.mxu0 0.0
    %780 = vmatprep.mubr.f32.mxu0 0.0
    %781 = vmatmul.mubr.f32.gmra.mrb[0].mxu0 %v711
    %v782 = vpop.f32.mrb[0].mxu0
    %v783 = vadd.f32 %v708, %v782
    %v784 = vpop.f32.mrb[0].mxu0
    %785 = vmatprep.mubr.f32.mxu0 0.0
    %786 = vmatmul.mubr.f32.gmra.mrb[0].mxu0 %v714
    %v787 = vpop.f32.mrb[0].mxu0
    %v788 = vadd.f32 %v708, %v787
    %v789 = vpop.f32.mrb[0].mxu0
    %790 = vdwg.mxu0
    %vm791 = vcmp.gt.f32.partialorder %v783, 0.0
    %vm792 = vcmp.gt.f32.partialorder %v788, 0.0
    %v793 = vmul.f32 %v783, 0.2
    %v794 = vmul.f32 %v788, 0.2
    %v795 = vsel %vm791, %v783, %v793
    %v796 = vsel %vm792, %v788, %v794
    %v797 = vmul.f32 %v795, %v795
    %v798 = vmul.f32 %v796, %v796
    %v799 = vsel %vm525, %v797, 0.0
    %800 = vadd.xlane.f32.xlu0 %v799
    %v801 = vpop.xlane.xlu0 %800
    %v802 = vsel %vm525, %v798, 0.0
    %803 = vadd.xlane.f32.xlu0 %v802
    %v804 = vpop.xlane.xlu0 %803
    %v805 = vmax.f32 %v801, 1e-24
    %v806 = vmax.f32 %v804, 1e-24
    %v807 = vrsqrt.pop %v805
    %v808 = vrsqrt.pop %v806
    %v809 = vmul.f32 %v795, %v807
    %v810 = vmul.f32 %v796, %v808
    %v811 = vsel %vm525, %v809, 0.0
    %v812 = vsel %vm525, %v810, 0.0
    %v813 = vadd.f32 %v811, %v812
    %814 = vadd.xlane.f32.xlu0 %v813
    %v815 = vpop.xlane.xlu0 %814
    %v816 = vmul.f32 %v815, %v543
    %v817 = vsub.f32 %v809, %v816
    %v818 = vsub.f32 %v810, %v816
    %v819 = vmul.f32 %v817, %v817
    %v820 = vmul.f32 %v818, %v818
    %v821 = vsel %vm525, %v819, 0.0
    %v822 = vsel %vm525, %v820, 0.0
    %v823 = vadd.f32 %v821, %v822
    %824 = vadd.xlane.f32.xlu0 %v823
    %v825 = vpop.xlane.xlu0 %824
    %v826 = vmul.f32 %v825, %v543
    %v827 = vadd.f32 %v826, 1e-05
    %v828 = vrsqrt.pop %v827
    %v829 = vmul.f32 %v817, %v828
    %v830 = vmul.f32 %v818, %v828
    %v831 = vadd.f32 %v829, %v557
    %v832 = vadd.f32 %v830, %v558
    %833 = vmatprep.subr.mxu0 0.0
    %834 = vmatpush1.msra.mxu0 %v831
    %835 = vmatprep.subr.mxu0 0.0
    %836 = vmatpush1.msra.mxu0 0.0
    %837 = vmatprep.subr.mxu0 0.0
    %838 = vmatpush1.msra.mxu0 0.0
    %839 = vmatprep.subr.mxu0 0.0
    %840 = vmatpush1.msra.mxu0 0.0
    %841 = vmatprep.subr.mxu0 0.0
    %842 = vmatpush1.msra.mxu0 0.0
    %843 = vmatprep.subr.mxu0 0.0
    %844 = vmatpush1.msra.mxu0 0.0
    %845 = vmatprep.subr.mxu0 0.0
    %846 = vmatpush1.msra.mxu0 0.0
    %847 = vmatprep.subr.mxu0 0.0
    %848 = vmatpush1.msra.mxu0 0.0
    %849 = vmatprep.subr.mxu0 0.0
    %850 = vmatpush1.msra.mxu0 0.0
    %851 = vmatprep.subr.mxu0 0.0
    %852 = vmatpush1.msra.mxu0 0.0
    %853 = vmatprep.subr.mxu0 0.0
    %854 = vmatpush1.msra.mxu0 0.0
    %855 = vmatprep.subr.mxu0 0.0
    %856 = vmatpush1.msra.mxu0 0.0
    %857 = vmatprep.subr.mxu0 0.0
    %858 = vmatpush1.msra.mxu0 0.0
    %859 = vmatprep.subr.mxu0 0.0
    %860 = vmatpush1.msra.mxu0 0.0
    %861 = vmatprep.subr.mxu0 0.0
    %862 = vmatpush1.msra.mxu0 0.0
    %863 = vmatprep.subr.mxu0 0.0
    %864 = vmatpush1.msra.mxu0 0.0
    %865 = vmatprep.subr.mxu0 0.0
    %866 = vmatpush1.msra.mxu0 0.0
    %867 = vmatprep.subr.mxu0 0.0
    %868 = vmatpush1.msra.mxu0 0.0
    %869 = vmatprep.subr.mxu0 0.0
    %870 = vmatpush1.msra.mxu0 0.0
    %871 = vmatprep.subr.mxu0 0.0
    %872 = vmatpush1.msra.mxu0 0.0
    %873 = vmatprep.subr.mxu0 0.0
    %874 = vmatpush1.msra.mxu0 0.0
    %875 = vmatprep.subr.mxu0 0.0
    %876 = vmatpush1.msra.mxu0 0.0
    %877 = vmatprep.subr.mxu0 0.0
    %878 = vmatpush1.msra.mxu0 0.0
    %879 = vmatprep.subr.mxu0 0.0
    %880 = vmatpush1.msra.mxu0 0.0
    %881 = vmatprep.subr.mxu0 0.0
    %882 = vmatpush1.msra.mxu0 0.0
    %883 = vmatprep.subr.mxu0 0.0
    %884 = vmatpush1.msra.mxu0 0.0
    %885 = vmatprep.subr.mxu0 0.0
    %886 = vmatpush1.msra.mxu0 0.0
    %887 = vmatprep.subr.mxu0 0.0
    %888 = vmatpush1.msra.mxu0 0.0
    %889 = vmatprep.subr.mxu0 0.0
    %890 = vmatpush1.msra.mxu0 0.0
    %891 = vmatprep.subr.mxu0 0.0
    %892 = vmatpush1.msra.mxu0 0.0
    %893 = vmatprep.subr.mxu0 0.0
    %894 = vmatpush1.msra.mxu0 0.0
    %895 = vmatprep.subr.mxu0 0.0
    %896 = vmatpush1.msra.mxu0 0.0
    %897 = vmatprep.mubr.f32.mxu0 0.0
    %898 = vmatmul.mubr.f32.gmra.mrb[0].mxu0 %v283
    %v899 = vpop.f32.mrb[0].mxu0
    %v900 = vadd.f32 0.0, %v899
    %v901 = vpop.f32.mrb[0].mxu0
    %902 = vdwg.mxu0
    %903 = vmatprep.subr.mxu0 0.0
    %904 = vmatpush1.msra.mxu0 %v832
    %905 = vmatprep.subr.mxu0 0.0
    %906 = vmatpush1.msra.mxu0 0.0
    %907 = vmatprep.subr.mxu0 0.0
    %908 = vmatpush1.msra.mxu0 0.0
    %909 = vmatprep.subr.mxu0 0.0
    %910 = vmatpush1.msra.mxu0 0.0
    %911 = vmatprep.subr.mxu0 0.0
    %912 = vmatpush1.msra.mxu0 0.0
    %913 = vmatprep.subr.mxu0 0.0
    %914 = vmatpush1.msra.mxu0 0.0
    %915 = vmatprep.subr.mxu0 0.0
    %916 = vmatpush1.msra.mxu0 0.0
    %917 = vmatprep.subr.mxu0 0.0
    %918 = vmatpush1.msra.mxu0 0.0
    %919 = vmatprep.subr.mxu0 0.0
    %920 = vmatpush1.msra.mxu0 0.0
    %921 = vmatprep.subr.mxu0 0.0
    %922 = vmatpush1.msra.mxu0 0.0
    %923 = vmatprep.subr.mxu0 0.0
    %924 = vmatpush1.msra.mxu0 0.0
    %925 = vmatprep.subr.mxu0 0.0
    %926 = vmatpush1.msra.mxu0 0.0
    %927 = vmatprep.subr.mxu0 0.0
    %928 = vmatpush1.msra.mxu0 0.0
    %929 = vmatprep.subr.mxu0 0.0
    %930 = vmatpush1.msra.mxu0 0.0
    %931 = vmatprep.subr.mxu0 0.0
    %932 = vmatpush1.msra.mxu0 0.0
    %933 = vmatprep.subr.mxu0 0.0
    %934 = vmatpush1.msra.mxu0 0.0
    %935 = vmatprep.subr.mxu0 0.0
    %936 = vmatpush1.msra.mxu0 0.0
    %937 = vmatprep.subr.mxu0 0.0
    %938 = vmatpush1.msra.mxu0 0.0
    %939 = vmatprep.subr.mxu0 0.0
    %940 = vmatpush1.msra.mxu0 0.0
    %941 = vmatprep.subr.mxu0 0.0
    %942 = vmatpush1.msra.mxu0 0.0
    %943 = vmatprep.subr.mxu0 0.0
    %944 = vmatpush1.msra.mxu0 0.0
    %945 = vmatprep.subr.mxu0 0.0
    %946 = vmatpush1.msra.mxu0 0.0
    %947 = vmatprep.subr.mxu0 0.0
    %948 = vmatpush1.msra.mxu0 0.0
    %949 = vmatprep.subr.mxu0 0.0
    %950 = vmatpush1.msra.mxu0 0.0
    %951 = vmatprep.subr.mxu0 0.0
    %952 = vmatpush1.msra.mxu0 0.0
    %953 = vmatprep.subr.mxu0 0.0
    %954 = vmatpush1.msra.mxu0 0.0
    %955 = vmatprep.subr.mxu0 0.0
    %956 = vmatpush1.msra.mxu0 0.0
    %957 = vmatprep.subr.mxu0 0.0
    %958 = vmatpush1.msra.mxu0 0.0
    %959 = vmatprep.subr.mxu0 0.0
    %960 = vmatpush1.msra.mxu0 0.0
    %961 = vmatprep.subr.mxu0 0.0
    %962 = vmatpush1.msra.mxu0 0.0
    %963 = vmatprep.subr.mxu0 0.0
    %964 = vmatpush1.msra.mxu0 0.0
    %965 = vmatprep.subr.mxu0 0.0
    %966 = vmatpush1.msra.mxu0 0.0
    %967 = vmatprep.mubr.f32.mxu0 0.0
    %968 = vmatmul.mubr.f32.gmra.mrb[0].mxu0 %v356
    %v969 = vpop.f32.mrb[0].mxu0
    %v970 = vadd.f32 0.0, %v969
    %v971 = vpop.f32.mrb[0].mxu0
    %972 = vdwg.mxu0
    %v973 = vld [vmem:[%s6] sm:$0xff]
    %v974 = vld [vmem:[%s6 + $0x8] sm:$0xff]
    %v975 = vld [vmem:[%s6 + $0x10] sm:$0xff]
    %v976 = vld [vmem:[%s6 + $0x18] sm:$0xff]
    %v977 = vld [vmem:[%s7] sm:$0x1]
    %v979 = vlaneseq
    %v980 = vshrl.u32 %v979, 7
    %v981 = vsub.s32 0, %v980
    %v982 = vrot.slane %v977, %v981
    %v985 = vsel %vm525, %v900, 0
    %v988 = vsel %vm525, %v970, 0
    %990 = vmatprep.subr.mxu0 0.0
    %991 = vmatpush1.msra.mxu0 %v973
    %992 = vmatprep.subr.mxu0 0.0
    %993 = vmatpush1.msra.mxu0 %v974
    %994 = vmatprep.subr.mxu0 0.0
    %995 = vmatpush1.msra.mxu0 %v975
    %996 = vmatprep.subr.mxu0 0.0
    %997 = vmatpush1.msra.mxu0 %v976
    %998 = vmatprep.subr.mxu0 0.0
    %999 = vmatpush1.msra.mxu0 0.0
    %1000 = vmatprep.subr.mxu0 0.0
    %1001 = vmatpush1.msra.mxu0 0.0
    %1002 = vmatprep.subr.mxu0 0.0
    %1003 = vmatpush1.msra.mxu0 0.0
    %1004 = vmatprep.subr.mxu0 0.0
    %1005 = vmatpush1.msra.mxu0 0.0
    %1006 = vmatprep.subr.mxu0 0.0
    %1007 = vmatpush1.msra.mxu0 0.0
    %1008 = vmatprep.subr.mxu0 0.0
    %1009 = vmatpush1.msra.mxu0 0.0
    %1010 = vmatprep.subr.mxu0 0.0
    %1011 = vmatpush1.msra.mxu0 0.0
    %1012 = vmatprep.subr.mxu0 0.0
    %1013 = vmatpush1.msra.mxu0 0.0
    %1014 = vmatprep.subr.mxu0 0.0
    %1015 = vmatpush1.msra.mxu0 0.0
    %1016 = vmatprep.subr.mxu0 0.0
    %1017 = vmatpush1.msra.mxu0 0.0
    %1018 = vmatprep.subr.mxu0 0.0
    %1019 = vmatpush1.msra.mxu0 0.0
    %1020 = vmatprep.subr.mxu0 0.0
    %1021 = vmatpush1.msra.mxu0 0.0
    %1022 = vmatprep.subr.mxu0 0.0
    %1023 = vmatpush1.msra.mxu0 0.0
    %1024 = vmatprep.subr.mxu0 0.0
    %1025 = vmatpush1.msra.mxu0 0.0
    %1026 = vmatprep.subr.mxu0 0.0
    %1027 = vmatpush1.msra.mxu0 0.0
    %1028 = vmatprep.subr.mxu0 0.0
    %1029 = vmatpush1.msra.mxu0 0.0
    %1030 = vmatprep.subr.mxu0 0.0
    %1031 = vmatpush1.msra.mxu0 0.0
    %1032 = vmatprep.subr.mxu0 0.0
    %1033 = vmatpush1.msra.mxu0 0.0
    %1034 = vmatprep.subr.mxu0 0.0
    %1035 = vmatpush1.msra.mxu0 0.0
    %1036 = vmatprep.subr.mxu0 0.0
    %1037 = vmatpush1.msra.mxu0 0.0
    %1038 = vmatprep.subr.mxu0 0.0
    %1039 = vmatpush1.msra.mxu0 0.0
    %1040 = vmatprep.subr.mxu0 0.0
    %1041 = vmatpush1.msra.mxu0 0.0
    %1042 = vmatprep.subr.mxu0 0.0
    %1043 = vmatpush1.msra.mxu0 0.0
    %1044 = vmatprep.subr.mxu0 0.0
    %1045 = vmatpush1.msra.mxu0 0.0
    %1046 = vmatprep.subr.mxu0 0.0
    %1047 = vmatpush1.msra.mxu0 0.0
    %1048 = vmatprep.subr.mxu0 0.0
    %1049 = vmatpush1.msra.mxu0 0.0
    %1050 = vmatprep.subr.mxu0 0.0
    %1051 = vmatpush1.msra.mxu0 0.0
    %1052 = vmatprep.subr.mxu0 0.0
    %1053 = vmatpush1.msra.mxu0 0.0
    %1054 = vmatprep.mubr.f32.mxu0 0.0
    %1055 = vmatmul.mubr.f32.gmra.mrb[0].mxu0 %v985
    %v1056 = vpop.f32.mrb[0].mxu0
    %v1057 = vadd.f32 %v982, %v1056
    %v1058 = vpop.f32.mrb[0].mxu0
    %1059 = vmatprep.mubr.f32.mxu0 0.0
    %1060 = vmatmul.mubr.f32.gmra.mrb[0].mxu0 %v988
    %v1061 = vpop.f32.mrb[0].mxu0
    %v1062 = vadd.f32 %v982, %v1061
    %v1063 = vpop.f32.mrb[0].mxu0
    %1064 = vdwg.mxu0
    %v1065 = vmul.f32 %v1057, %v1057
    %v1066 = vmul.f32 %v1062, %v1062
    %1067 = vadd.xlane.f32.xlu0 %v1065
    %v1068 = vpop.xlane.xlu0 %1067
    %1069 = vadd.xlane.f32.xlu0 %v1066
    %v1070 = vpop.xlane.xlu0 %1069
    %v1071 = vmax.f32 %v1068, 1e-24
    %v1072 = vmax.f32 %v1070, 1e-24
    %v1073 = vrsqrt.pop %v1071
    %v1074 = vrsqrt.pop %v1072
    %v1075 = vmul.f32 %v1057, %v1073
    %v1076 = vmul.f32 %v1062, %v1074
    %1077 = vst [vmem:[#allocation4] sm:$0xff] %v1075
    %1078 = vst [vmem:[#allocation4 + $0x8] sm:$0xff] %v1076
    %v1079 = vadd.f32 %v232, %v75
    %v1080 = vadd.f32 %v234, %v75
    %v1081 = vsel %vm76, %v1079, 0.0
    %1082 = vadd.xlane.f32.xlu0 %v1081
    %v1083 = vpop.xlane.xlu0 %1082
    %v1084 = vsel %vm76, %v1080, 0.0
    %1085 = vadd.xlane.f32.xlu0 %v1084
    %v1086 = vpop.xlane.xlu0 %1085
    %v1087 = vadd.f32 %v1083, 1e-05
    %v1088 = vadd.f32 %v1086, 1e-05
    %v1089 = vrsqrt.pop %v1087
    %v1090 = vrsqrt.pop %v1088
    %v1091 = vmul.f32 %v1089, %v75
    %v1092 = vmul.f32 %v1090, %v75
    %v1093 = vsel %vm76, %v1091, 0.0
    %v1094 = vrot.slane %v1093, 4
    %v1095 = vadd.f32 %v1093, %v1094
    %v1096 = vrot.slane %v1095, 2
    %v1097 = vadd.f32 %v1095, %v1096
    %v1098 = vrot.slane %v1097, 1
    %v1099 = vadd.f32 %v1097, %v1098
    %v1100 = vsel %vm76, %v1092, 0.0
    %v1101 = vrot.slane %v1100, 4
    %v1102 = vadd.f32 %v1100, %v1101
    %v1103 = vrot.slane %v1102, 2
    %v1104 = vadd.f32 %v1102, %v1103
    %v1105 = vrot.slane %v1104, 1
    %v1106 = vadd.f32 %v1104, %v1105
    %v1107 = vmul.f32 %v1079, %v1089
    %v1108 = vmul.f32 %v1080, %v1090
    %v1109 = vmul.f32 %v1107, %v1099
    %v1110 = vmul.f32 %v1108, %v1106
    %v1112 = vsel %vm76, %v1109, 0
    %1114 = vmatprep.subr.mxu0 0.0
    %1115 = vmatpush1.msra.mxu0 %v1075
    %1116 = vmatprep.subr.mxu0 0.0
    %1117 = vmatpush1.msra.mxu0 0.0
    %1118 = vmatprep.subr.mxu0 0.0
    %1119 = vmatpush1.msra.mxu0 0.0
    %1120 = vmatprep.subr.mxu0 0.0
    %1121 = vmatpush1.msra.mxu0 0.0
    %1122 = vmatprep.subr.mxu0 0.0
    %1123 = vmatpush1.msra.mxu0 0.0
    %1124 = vmatprep.subr.mxu0 0.0
    %1125 = vmatpush1.msra.mxu0 0.0
    %1126 = vmatprep.subr.mxu0 0.0
    %1127 = vmatpush1.msra.mxu0 0.0
    %1128 = vmatprep.subr.mxu0 0.0
    %1129 = vmatpush1.msra.mxu0 0.0
    %1130 = vmatprep.subr.mxu0 0.0
    %1131 = vmatpush1.msra.mxu0 0.0
    %1132 = vmatprep.subr.mxu0 0.0
    %1133 = vmatpush1.msra.mxu0 0.0
    %1134 = vmatprep.subr.mxu0 0.0
    %1135 = vmatpush1.msra.mxu0 0.0
    %1136 = vmatprep.subr.mxu0 0.0
    %1137 = vmatpush1.msra.mxu0 0.0
    %1138 = vmatprep.subr.mxu0 0.0
    %1139 = vmatpush1.msra.mxu0 0.0
    %1140 = vmatprep.subr.mxu0 0.0
    %1141 = vmatpush1.msra.mxu0 0.0
    %1142 = vmatprep.subr.mxu0 0.0
    %1143 = vmatpush1.msra.mxu0 0.0
    %1144 = vmatprep.subr.mxu0 0.0
    %1145 = vmatpush1.msra.mxu0 0.0
    %1146 = vmatprep.subr.mxu0 0.0
    %1147 = vmatpush1.msra.mxu0 0.0
    %1148 = vmatprep.subr.mxu0 0.0
    %1149 = vmatpush1.msra.mxu0 0.0
    %1150 = vmatprep.subr.mxu0 0.0
    %1151 = vmatpush1.msra.mxu0 0.0
    %1152 = vmatprep.subr.mxu0 0.0
    %1153 = vmatpush1.msra.mxu0 0.0
    %1154 = vmatprep.subr.mxu0 0.0
    %1155 = vmatpush1.msra.mxu0 0.0
    %1156 = vmatprep.subr.mxu0 0.0
    %1157 = vmatpush1.msra.mxu0 0.0
    %1158 = vmatprep.subr.mxu0 0.0
    %1159 = vmatpush1.msra.mxu0 0.0
    %1160 = vmatprep.subr.mxu0 0.0
    %1161 = vmatpush1.msra.mxu0 0.0
    %1162 = vmatprep.subr.mxu0 0.0
    %1163 = vmatpush1.msra.mxu0 0.0
    %1164 = vmatprep.subr.mxu0 0.0
    %1165 = vmatpush1.msra.mxu0 0.0
    %1166 = vmatprep.subr.mxu0 0.0
    %1167 = vmatpush1.msra.mxu0 0.0
    %1168 = vmatprep.subr.mxu0 0.0
    %1169 = vmatpush1.msra.mxu0 0.0
    %1170 = vmatprep.subr.mxu0 0.0
    %1171 = vmatpush1.msra.mxu0 0.0
    %1172 = vmatprep.subr.mxu0 0.0
    %1173 = vmatpush1.msra.mxu0 0.0
    %1174 = vmatprep.subr.mxu0 0.0
    %1175 = vmatpush1.msra.mxu0 0.0
    %1176 = vmatprep.subr.mxu0 0.0
    %1177 = vmatpush1.msra.mxu0 0.0
    %1178 = vmatprep.mubr.f32.mxu0 0.0
    %1179 = vmatmul.mubr.f32.gmra.mrb[0].mxu0 %v1112
    %v1180 = vpop.f32.mrb[0].mxu0
    %v1181 = vadd.f32 0.0, %v1180
    %v1182 = vpop.f32.mrb[0].mxu0
    %1183 = vdwg.mxu0
    %v1185 = vsel %vm76, %v1110, 0
    %1187 = vmatprep.subr.mxu0 0.0
    %1188 = vmatpush1.msra.mxu0 %v1076
    %1189 = vmatprep.subr.mxu0 0.0
    %1190 = vmatpush1.msra.mxu0 0.0
    %1191 = vmatprep.subr.mxu0 0.0
    %1192 = vmatpush1.msra.mxu0 0.0
    %1193 = vmatprep.subr.mxu0 0.0
    %1194 = vmatpush1.msra.mxu0 0.0
    %1195 = vmatprep.subr.mxu0 0.0
    %1196 = vmatpush1.msra.mxu0 0.0
    %1197 = vmatprep.subr.mxu0 0.0
    %1198 = vmatpush1.msra.mxu0 0.0
    %1199 = vmatprep.subr.mxu0 0.0
    %1200 = vmatpush1.msra.mxu0 0.0
    %1201 = vmatprep.subr.mxu0 0.0
    %1202 = vmatpush1.msra.mxu0 0.0
    %1203 = vmatprep.subr.mxu0 0.0
    %1204 = vmatpush1.msra.mxu0 0.0
    %1205 = vmatprep.subr.mxu0 0.0
    %1206 = vmatpush1.msra.mxu0 0.0
    %1207 = vmatprep.subr.mxu0 0.0
    %1208 = vmatpush1.msra.mxu0 0.0
    %1209 = vmatprep.subr.mxu0 0.0
    %1210 = vmatpush1.msra.mxu0 0.0
    %1211 = vmatprep.subr.mxu0 0.0
    %1212 = vmatpush1.msra.mxu0 0.0
    %1213 = vmatprep.subr.mxu0 0.0
    %1214 = vmatpush1.msra.mxu0 0.0
    %1215 = vmatprep.subr.mxu0 0.0
    %1216 = vmatpush1.msra.mxu0 0.0
    %1217 = vmatprep.subr.mxu0 0.0
    %1218 = vmatpush1.msra.mxu0 0.0
    %1219 = vmatprep.subr.mxu0 0.0
    %1220 = vmatpush1.msra.mxu0 0.0
    %1221 = vmatprep.subr.mxu0 0.0
    %1222 = vmatpush1.msra.mxu0 0.0
    %1223 = vmatprep.subr.mxu0 0.0
    %1224 = vmatpush1.msra.mxu0 0.0
    %1225 = vmatprep.subr.mxu0 0.0
    %1226 = vmatpush1.msra.mxu0 0.0
    %1227 = vmatprep.subr.mxu0 0.0
    %1228 = vmatpush1.msra.mxu0 0.0
    %1229 = vmatprep.subr.mxu0 0.0
    %1230 = vmatpush1.msra.mxu0 0.0
    %1231 = vmatprep.subr.mxu0 0.0
    %1232 = vmatpush1.msra.mxu0 0.0
    %1233 = vmatprep.subr.mxu0 0.0
    %1234 = vmatpush1.msra.mxu0 0.0
    %1235 = vmatprep.subr.mxu0 0.0
    %1236 = vmatpush1.msra.mxu0 0.0
    %1237 = vmatprep.subr.mxu0 0.0
    %1238 = vmatpush1.msra.mxu0 0.0
    %1239 = vmatprep.subr.mxu0 0.0
    %1240 = vmatpush1.msra.mxu0 0.0
    %1241 = vmatprep.subr.mxu0 0.0
    %1242 = vmatpush1.msra.mxu0 0.0
    %1243 = vmatprep.subr.mxu0 0.0
    %1244 = vmatpush1.msra.mxu0 0.0
    %1245 = vmatprep.subr.mxu0 0.0
    %1246 = vmatpush1.msra.mxu0 0.0
    %1247 = vmatprep.subr.mxu0 0.0
    %1248 = vmatpush1.msra.mxu0 0.0
    %1249 = vmatprep.subr.mxu0 0.0
    %1250 = vmatpush1.msra.mxu0 0.0
    %1251 = vmatprep.mubr.f32.mxu0 0.0
    %1252 = vmatmul.mubr.f32.gmra.mrb[0].mxu0 %v1185
    %v1253 = vpop.f32.mrb[0].mxu0
    %v1254 = vadd.f32 0.0, %v1253
    %v1255 = vpop.f32.mrb[0].mxu0
    %1256 = vdwg.mxu0
    %v1257 = vld [vmem:[%s8] sm:$0xff]
    %v1258 = vld [vmem:[%s8 + $0x8] sm:$0xff]
    %v1259 = vld [vmem:[%s8 + $0x10] sm:$0xff]
    %v1260 = vld [vmem:[%s8 + $0x18] sm:$0xff]
    %v1261 = vld [vmem:[%s8 + $0x20] sm:$0xff]
    %v1262 = vld [vmem:[%s8 + $0x28] sm:$0xff]
    %v1263 = vld [vmem:[%s8 + $0x30] sm:$0xff]
    %v1264 = vld [vmem:[%s8 + $0x38] sm:$0xff]
    %v1265 = vld [vmem:[%s8 + $0x40] sm:$0xff]
    %v1266 = vld [vmem:[%s8 + $0x48] sm:$0xff]
    %v1267 = vld [vmem:[%s8 + $0x50] sm:$0xff]
    %v1268 = vld [vmem:[%s8 + $0x58] sm:$0xff]
    %v1269 = vld [vmem:[%s8 + $0x60] sm:$0xff]
    %v1270 = vld [vmem:[%s8 + $0x68] sm:$0xff]
    %v1271 = vld [vmem:[%s8 + $0x70] sm:$0xff]
    %v1272 = vld [vmem:[%s8 + $0x78] sm:$0xff]
    %v1273 = vld [vmem:[%s9] sm:$0x1]
    %v1275 = vlaneseq
    %v1276 = vshrl.u32 %v1275, 7
    %v1277 = vsub.s32 0, %v1276
    %v1278 = vrot.slane %v1273, %v1277
    %1280 = vmatprep.subr.mxu0 0.0
    %1281 = vmatpush1.msra.mxu0 %v1257
    %1282 = vmatprep.subr.mxu0 0.0
    %1283 = vmatpush1.msra.mxu0 %v1258
    %1284 = vmatprep.subr.mxu0 0.0
    %1285 = vmatpush1.msra.mxu0 %v1259
    %1286 = vmatprep.subr.mxu0 0.0
    %1287 = vmatpush1.msra.mxu0 %v1260
    %1288 = vmatprep.subr.mxu0 0.0
    %1289 = vmatpush1.msra.mxu0 %v1261
    %1290 = vmatprep.subr.mxu0 0.0
    %1291 = vmatpush1.msra.mxu0 %v1262
    %1292 = vmatprep.subr.mxu0 0.0
    %1293 = vmatpush1.msra.mxu0 %v1263
    %1294 = vmatprep.subr.mxu0 0.0
    %1295 = vmatpush1.msra.mxu0 %v1264
    %1296 = vmatprep.subr.mxu0 0.0
    %1297 = vmatpush1.msra.mxu0 %v1265
    %1298 = vmatprep.subr.mxu0 0.0
    %1299 = vmatpush1.msra.mxu0 %v1266
    %1300 = vmatprep.subr.mxu0 0.0
    %1301 = vmatpush1.msra.mxu0 %v1267
    %1302 = vmatprep.subr.mxu0 0.0
    %1303 = vmatpush1.msra.mxu0 %v1268
    %1304 = vmatprep.subr.mxu0 0.0
    %1305 = vmatpush1.msra.mxu0 %v1269
    %1306 = vmatprep.subr.mxu0 0.0
    %1307 = vmatpush1.msra.mxu0 %v1270
    %1308 = vmatprep.subr.mxu0 0.0
    %1309 = vmatpush1.msra.mxu0 %v1271
    %1310 = vmatprep.subr.mxu0 0.0
    %1311 = vmatpush1.msra.mxu0 %v1272
    %1312 = vmatprep.subr.mxu0 0.0
    %1313 = vmatpush1.msra.mxu0 0.0
    %1314 = vmatprep.subr.mxu0 0.0
    %1315 = vmatpush1.msra.mxu0 0.0
    %1316 = vmatprep.subr.mxu0 0.0
    %1317 = vmatpush1.msra.mxu0 0.0
    %1318 = vmatprep.subr.mxu0 0.0
    %1319 = vmatpush1.msra.mxu0 0.0
    %1320 = vmatprep.subr.mxu0 0.0
    %1321 = vmatpush1.msra.mxu0 0.0
    %1322 = vmatprep.subr.mxu0 0.0
    %1323 = vmatpush1.msra.mxu0 0.0
    %1324 = vmatprep.subr.mxu0 0.0
    %1325 = vmatpush1.msra.mxu0 0.0
    %1326 = vmatprep.subr.mxu0 0.0
    %1327 = vmatpush1.msra.mxu0 0.0
    %1328 = vmatprep.subr.mxu0 0.0
    %1329 = vmatpush1.msra.mxu0 0.0
    %1330 = vmatprep.subr.mxu0 0.0
    %1331 = vmatpush1.msra.mxu0 0.0
    %1332 = vmatprep.subr.mxu0 0.0
    %1333 = vmatpush1.msra.mxu0 0.0
    %1334 = vmatprep.subr.mxu0 0.0
    %1335 = vmatpush1.msra.mxu0 0.0
    %1336 = vmatprep.subr.mxu0 0.0
    %1337 = vmatpush1.msra.mxu0 0.0
    %1338 = vmatprep.subr.mxu0 0.0
    %1339 = vmatpush1.msra.mxu0 0.0
    %1340 = vmatprep.subr.mxu0 0.0
    %1341 = vmatpush1.msra.mxu0 0.0
    %1342 = vmatprep.subr.mxu0 0.0
    %1343 = vmatpush1.msra.mxu0 0.0
    %1344 = vmatprep.mubr.f32.mxu0 0.0
    %1345 = vmatmul.mubr.f32.gmra.mrb[0].mxu0 %v1181
    %v1346 = vpop.f32.mrb[0].mxu0
    %v1347 = vadd.f32 %v1278, %v1346
    %v1348 = vpop.f32.mrb[0].mxu0
    %1349 = vmatprep.mubr.f32.mxu0 0.0
    %1350 = vmatmul.mubr.f32.gmra.mrb[0].mxu0 %v1254
    %v1351 = vpop.f32.mrb[0].mxu0
    %v1352 = vadd.f32 %v1278, %v1351
    %v1353 = vpop.f32.mrb[0].mxu0
    %1354 = vdwg.mxu0
    %vm1355 = vcmp.gt.f32.partialorder %v1347, 0.0
    %vm1356 = vcmp.gt.f32.partialorder %v1352, 0.0
    %v1357 = vmul.f32 %v1347, 0.2
    %v1358 = vmul.f32 %v1352, 0.2
    %v1359 = vsel %vm1355, %v1347, %v1357
    %v1360 = vsel %vm1356, %v1352, %v1358
    %v1361 = vmul.f32 %v1359, %v1359
    %v1362 = vmul.f32 %v1360, %v1360
    %v1363 = vsel %vm525, %v1361, 0.0
    %1364 = vadd.xlane.f32.xlu0 %v1363
    %v1365 = vpop.xlane.xlu0 %1364
    %v1366 = vsel %vm525, %v1362, 0.0
    %1367 = vadd.xlane.f32.xlu0 %v1366
    %v1368 = vpop.xlane.xlu0 %1367
    %v1369 = vmax.f32 %v1365, 1e-24
    %v1370 = vmax.f32 %v1368, 1e-24
    %v1371 = vrsqrt.pop %v1369
    %v1372 = vrsqrt.pop %v1370
    %v1373 = vmul.f32 %v1359, %v1371
    %v1374 = vmul.f32 %v1360, %v1372
    %v1375 = vsel %vm525, %v1373, 0.0
    %v1376 = vsel %vm525, %v1374, 0.0
    %v1377 = vadd.f32 %v1375, %v1376
    %1378 = vadd.xlane.f32.xlu0 %v1377
    %v1379 = vpop.xlane.xlu0 %1378
    %v1380 = vmul.f32 %v1379, %v543
    %v1381 = vsub.f32 %v1373, %v1380
    %v1382 = vsub.f32 %v1374, %v1380
    %v1383 = vmul.f32 %v1381, %v1381
    %v1384 = vmul.f32 %v1382, %v1382
    %v1385 = vsel %vm525, %v1383, 0.0
    %v1386 = vsel %vm525, %v1384, 0.0
    %v1387 = vadd.f32 %v1385, %v1386
    %1388 = vadd.xlane.f32.xlu0 %v1387
    %v1389 = vpop.xlane.xlu0 %1388
    %v1390 = vmul.f32 %v1389, %v543
    %v1391 = vadd.f32 %v1390, 1e-05
    %v1392 = vrsqrt.pop %v1391
    %v1393 = vmul.f32 %v1381, %v1392
    %v1394 = vmul.f32 %v1382, %v1392
    %1395 = vmatprep.subr.mxu0 0.0
    %1396 = vmatpush1.msra.mxu0 %v1393
    %1397 = vmatprep.subr.mxu0 0.0
    %1398 = vmatpush1.msra.mxu0 0.0
    %1399 = vmatprep.subr.mxu0 0.0
    %1400 = vmatpush1.msra.mxu0 0.0
    %1401 = vmatprep.subr.mxu0 0.0
    %1402 = vmatpush1.msra.mxu0 0.0
    %1403 = vmatprep.subr.mxu0 0.0
    %1404 = vmatpush1.msra.mxu0 0.0
    %1405 = vmatprep.subr.mxu0 0.0
    %1406 = vmatpush1.msra.mxu0 0.0
    %1407 = vmatprep.subr.mxu0 0.0
    %1408 = vmatpush1.msra.mxu0 0.0
    %1409 = vmatprep.subr.mxu0 0.0
    %1410 = vmatpush1.msra.mxu0 0.0
    %1411 = vmatprep.subr.mxu0 0.0
    %1412 = vmatpush1.msra.mxu0 0.0
    %1413 = vmatprep.subr.mxu0 0.0
    %1414 = vmatpush1.msra.mxu0 0.0
    %1415 = vmatprep.subr.mxu0 0.0
    %1416 = vmatpush1.msra.mxu0 0.0
    %1417 = vmatprep.subr.mxu0 0.0
    %1418 = vmatpush1.msra.mxu0 0.0
    %1419 = vmatprep.subr.mxu0 0.0
    %1420 = vmatpush1.msra.mxu0 0.0
    %1421 = vmatprep.subr.mxu0 0.0
    %1422 = vmatpush1.msra.mxu0 0.0
    %1423 = vmatprep.subr.mxu0 0.0
    %1424 = vmatpush1.msra.mxu0 0.0
    %1425 = vmatprep.subr.mxu0 0.0
    %1426 = vmatpush1.msra.mxu0 0.0
    %1427 = vmatprep.subr.mxu0 0.0
    %1428 = vmatpush1.msra.mxu0 0.0
    %1429 = vmatprep.subr.mxu0 0.0
    %1430 = vmatpush1.msra.mxu0 0.0
    %1431 = vmatprep.subr.mxu0 0.0
    %1432 = vmatpush1.msra.mxu0 0.0
    %1433 = vmatprep.subr.mxu0 0.0
    %1434 = vmatpush1.msra.mxu0 0.0
    %1435 = vmatprep.subr.mxu0 0.0
    %1436 = vmatpush1.msra.mxu0 0.0
    %1437 = vmatprep.subr.mxu0 0.0
    %1438 = vmatpush1.msra.mxu0 0.0
    %1439 = vmatprep.subr.mxu0 0.0
    %1440 = vmatpush1.msra.mxu0 0.0
    %1441 = vmatprep.subr.mxu0 0.0
    %1442 = vmatpush1.msra.mxu0 0.0
    %1443 = vmatprep.subr.mxu0 0.0
    %1444 = vmatpush1.msra.mxu0 0.0
    %1445 = vmatprep.subr.mxu0 0.0
    %1446 = vmatpush1.msra.mxu0 0.0
    %1447 = vmatprep.subr.mxu0 0.0
    %1448 = vmatpush1.msra.mxu0 0.0
    %1449 = vmatprep.subr.mxu0 0.0
    %1450 = vmatpush1.msra.mxu0 0.0
    %1451 = vmatprep.subr.mxu0 0.0
    %1452 = vmatpush1.msra.mxu0 0.0
    %1453 = vmatprep.subr.mxu0 0.0
    %1454 = vmatpush1.msra.mxu0 0.0
    %1455 = vmatprep.subr.mxu0 0.0
    %1456 = vmatpush1.msra.mxu0 0.0
    %1457 = vmatprep.subr.mxu0 0.0
    %1458 = vmatpush1.msra.mxu0 0.0
    %1459 = vmatprep.mubr.f32.mxu0 0.0
    %1460 = vmatmul.mubr.f32.gmra.mrb[0].mxu0 %v1112
    %v1461 = vpop.f32.mrb[0].mxu0
    %v1462 = vadd.f32 0.0, %v1461
    %v1463 = vpop.f32.mrb[0].mxu0
    %1464 = vdwg.mxu0
    %1465 = vmatprep.subr.mxu0 0.0
    %1466 = vmatpush1.msra.mxu0 %v1394
    %1467 = vmatprep.subr.mxu0 0.0
    %1468 = vmatpush1.msra.mxu0 0.0
    %1469 = vmatprep.subr.mxu0 0.0
    %1470 = vmatpush1.msra.mxu0 0.0
    %1471 = vmatprep.subr.mxu0 0.0
    %1472 = vmatpush1.msra.mxu0 0.0
    %1473 = vmatprep.subr.mxu0 0.0
    %1474 = vmatpush1.msra.mxu0 0.0
    %1475 = vmatprep.subr.mxu0 0.0
    %1476 = vmatpush1.msra.mxu0 0.0
    %1477 = vmatprep.subr.mxu0 0.0
    %1478 = vmatpush1.msra.mxu0 0.0
    %1479 = vmatprep.subr.mxu0 0.0
    %1480 = vmatpush1.msra.mxu0 0.0
    %1481 = vmatprep.subr.mxu0 0.0
    %1482 = vmatpush1.msra.mxu0 0.0
    %1483 = vmatprep.subr.mxu0 0.0
    %1484 = vmatpush1.msra.mxu0 0.0
    %1485 = vmatprep.subr.mxu0 0.0
    %1486 = vmatpush1.msra.mxu0 0.0
    %1487 = vmatprep.subr.mxu0 0.0
    %1488 = vmatpush1.msra.mxu0 0.0
    %1489 = vmatprep.subr.mxu0 0.0
    %1490 = vmatpush1.msra.mxu0 0.0
    %1491 = vmatprep.subr.mxu0 0.0
    %1492 = vmatpush1.msra.mxu0 0.0
    %1493 = vmatprep.subr.mxu0 0.0
    %1494 = vmatpush1.msra.mxu0 0.0
    %1495 = vmatprep.subr.mxu0 0.0
    %1496 = vmatpush1.msra.mxu0 0.0
    %1497 = vmatprep.subr.mxu0 0.0
    %1498 = vmatpush1.msra.mxu0 0.0
    %1499 = vmatprep.subr.mxu0 0.0
    %1500 = vmatpush1.msra.mxu0 0.0
    %1501 = vmatprep.subr.mxu0 0.0
    %1502 = vmatpush1.msra.mxu0 0.0
    %1503 = vmatprep.subr.mxu0 0.0
    %1504 = vmatpush1.msra.mxu0 0.0
    %1505 = vmatprep.subr.mxu0 0.0
    %1506 = vmatpush1.msra.mxu0 0.0
    %1507 = vmatprep.subr.mxu0 0.0
    %1508 = vmatpush1.msra.mxu0 0.0
    %1509 = vmatprep.subr.mxu0 0.0
    %1510 = vmatpush1.msra.mxu0 0.0
    %1511 = vmatprep.subr.mxu0 0.0
    %1512 = vmatpush1.msra.mxu0 0.0
    %1513 = vmatprep.subr.mxu0 0.0
    %1514 = vmatpush1.msra.mxu0 0.0
    %1515 = vmatprep.subr.mxu0 0.0
    %1516 = vmatpush1.msra.mxu0 0.0
    %1517 = vmatprep.subr.mxu0 0.0
    %1518 = vmatpush1.msra.mxu0 0.0
    %1519 = vmatprep.subr.mxu0 0.0
    %1520 = vmatpush1.msra.mxu0 0.0
    %1521 = vmatprep.subr.mxu0 0.0
    %1522 = vmatpush1.msra.mxu0 0.0
    %1523 = vmatprep.subr.mxu0 0.0
    %1524 = vmatpush1.msra.mxu0 0.0
    %1525 = vmatprep.subr.mxu0 0.0
    %1526 = vmatpush1.msra.mxu0 0.0
    %1527 = vmatprep.subr.mxu0 0.0
    %1528 = vmatpush1.msra.mxu0 0.0
    %1529 = vmatprep.mubr.f32.mxu0 0.0
    %1530 = vmatmul.mubr.f32.gmra.mrb[0].mxu0 %v1185
    %v1531 = vpop.f32.mrb[0].mxu0
    %v1532 = vadd.f32 0.0, %v1531
    %v1533 = vpop.f32.mrb[0].mxu0
    %1534 = vdwg.mxu0
    %v1535 = vld [vmem:[%s10] sm:$0xff]
    %v1536 = vld [vmem:[%s10 + $0x8] sm:$0xff]
    %v1537 = vld [vmem:[%s10 + $0x10] sm:$0xff]
    %v1538 = vld [vmem:[%s10 + $0x18] sm:$0xff]
    %v1539 = vld [vmem:[%s11] sm:$0x1]
    %v1541 = vlaneseq
    %v1542 = vshrl.u32 %v1541, 7
    %v1543 = vsub.s32 0, %v1542
    %v1544 = vrot.slane %v1539, %v1543
    %v1547 = vsel %vm525, %v1462, 0
    %v1550 = vsel %vm525, %v1532, 0
    %1552 = vmatprep.subr.mxu0 0.0
    %1553 = vmatpush1.msra.mxu0 %v1535
    %1554 = vmatprep.subr.mxu0 0.0
    %1555 = vmatpush1.msra.mxu0 %v1536
    %1556 = vmatprep.subr.mxu0 0.0
    %1557 = vmatpush1.msra.mxu0 %v1537
    %1558 = vmatprep.subr.mxu0 0.0
    %1559 = vmatpush1.msra.mxu0 %v1538
    %1560 = vmatprep.subr.mxu0 0.0
    %1561 = vmatpush1.msra.mxu0 0.0
    %1562 = vmatprep.subr.mxu0 0.0
    %1563 = vmatpush1.msra.mxu0 0.0
    %1564 = vmatprep.subr.mxu0 0.0
    %1565 = vmatpush1.msra.mxu0 0.0
    %1566 = vmatprep.subr.mxu0 0.0
    %1567 = vmatpush1.msra.mxu0 0.0
    %1568 = vmatprep.subr.mxu0 0.0
    %1569 = vmatpush1.msra.mxu0 0.0
    %1570 = vmatprep.subr.mxu0 0.0
    %1571 = vmatpush1.msra.mxu0 0.0
    %1572 = vmatprep.subr.mxu0 0.0
    %1573 = vmatpush1.msra.mxu0 0.0
    %1574 = vmatprep.subr.mxu0 0.0
    %1575 = vmatpush1.msra.mxu0 0.0
    %1576 = vmatprep.subr.mxu0 0.0
    %1577 = vmatpush1.msra.mxu0 0.0
    %1578 = vmatprep.subr.mxu0 0.0
    %1579 = vmatpush1.msra.mxu0 0.0
    %1580 = vmatprep.subr.mxu0 0.0
    %1581 = vmatpush1.msra.mxu0 0.0
    %1582 = vmatprep.subr.mxu0 0.0
    %1583 = vmatpush1.msra.mxu0 0.0
    %1584 = vmatprep.subr.mxu0 0.0
    %1585 = vmatpush1.msra.mxu0 0.0
    %1586 = vmatprep.subr.mxu0 0.0
    %1587 = vmatpush1.msra.mxu0 0.0
    %1588 = vmatprep.subr.mxu0 0.0
    %1589 = vmatpush1.msra.mxu0 0.0
    %1590 = vmatprep.subr.mxu0 0.0
    %1591 = vmatpush1.msra.mxu0 0.0
    %1592 = vmatprep.subr.mxu0 0.0
    %1593 = vmatpush1.msra.mxu0 0.0
    %1594 = vmatprep.subr.mxu0 0.0
    %1595 = vmatpush1.msra.mxu0 0.0
    %1596 = vmatprep.subr.mxu0 0.0
    %1597 = vmatpush1.msra.mxu0 0.0
    %1598 = vmatprep.subr.mxu0 0.0
    %1599 = vmatpush1.msra.mxu0 0.0
    %1600 = vmatprep.subr.mxu0 0.0
    %1601 = vmatpush1.msra.mxu0 0.0
    %1602 = vmatprep.subr.mxu0 0.0
    %1603 = vmatpush1.msra.mxu0 0.0
    %1604 = vmatprep.subr.mxu0 0.0
    %1605 = vmatpush1.msra.mxu0 0.0
    %1606 = vmatprep.subr.mxu0 0.0
    %1607 = vmatpush1.msra.mxu0 0.0
    %1608 = vmatprep.subr.mxu0 0.0
    %1609 = vmatpush1.msra.mxu0 0.0
    %1610 = vmatprep.subr.mxu0 0.0
    %1611 = vmatpush1.msra.mxu0 0.0
    %1612 = vmatprep.subr.mxu0 0.0
    %1613 = vmatpush1.msra.mxu0 0.0
    %1614 = vmatprep.subr.mxu0 0.0
    %1615 = vmatpush1.msra.mxu0 0.0
    %1616 = vmatprep.mubr.f32.mxu0 0.0
    %1617 = vmatmul.mubr.f32.gmra.mrb[0].mxu0 %v1547
    %v1618 = vpop.f32.mrb[0].mxu0
    %v1619 = vadd.f32 %v1544, %v1618
    %v1620 = vpop.f32.mrb[0].mxu0
    %1621 = vmatprep.mubr.f32.mxu0 0.0
    %1622 = vmatmul.mubr.f32.gmra.mrb[0].mxu0 %v1550
    %v1623 = vpop.f32.mrb[0].mxu0
    %v1624 = vadd.f32 %v1544, %v1623
    %v1625 = vpop.f32.mrb[0].mxu0
    %1626 = vdwg.mxu0
    %vm1627 = vcmp.gt.f32.partialorder %v1619, 0.0
    %vm1628 = vcmp.gt.f32.partialorder %v1624, 0.0
    %v1629 = vmul.f32 %v1619, 0.2
    %v1630 = vmul.f32 %v1624, 0.2
    %v1631 = vsel %vm1627, %v1619, %v1629
    %v1632 = vsel %vm1628, %v1624, %v1630
    %v1633 = vmul.f32 %v1631, %v1631
    %v1634 = vmul.f32 %v1632, %v1632
    %v1635 = vsel %vm525, %v1633, 0.0
    %1636 = vadd.xlane.f32.xlu0 %v1635
    %v1637 = vpop.xlane.xlu0 %1636
    %v1638 = vsel %vm525, %v1634, 0.0
    %1639 = vadd.xlane.f32.xlu0 %v1638
    %v1640 = vpop.xlane.xlu0 %1639
    %v1641 = vmax.f32 %v1637, 1e-24
    %v1642 = vmax.f32 %v1640, 1e-24
    %v1643 = vrsqrt.pop %v1641
    %v1644 = vrsqrt.pop %v1642
    %v1645 = vmul.f32 %v1631, %v1643
    %v1646 = vmul.f32 %v1632, %v1644
    %v1647 = vsel %vm525, %v1645, 0.0
    %v1648 = vsel %vm525, %v1646, 0.0
    %v1649 = vadd.f32 %v1647, %v1648
    %1650 = vadd.xlane.f32.xlu0 %v1649
    %v1651 = vpop.xlane.xlu0 %1650
    %v1652 = vmul.f32 %v1651, %v543
    %v1653 = vsub.f32 %v1645, %v1652
    %v1654 = vsub.f32 %v1646, %v1652
    %v1655 = vmul.f32 %v1653, %v1653
    %v1656 = vmul.f32 %v1654, %v1654
    %v1657 = vsel %vm525, %v1655, 0.0
    %v1658 = vsel %vm525, %v1656, 0.0
    %v1659 = vadd.f32 %v1657, %v1658
    %1660 = vadd.xlane.f32.xlu0 %v1659
    %v1661 = vpop.xlane.xlu0 %1660
    %v1662 = vmul.f32 %v1661, %v543
    %v1663 = vadd.f32 %v1662, 1e-05
    %v1664 = vrsqrt.pop %v1663
    %v1665 = vmul.f32 %v1653, %v1664
    %v1666 = vmul.f32 %v1654, %v1664
    %v1667 = vadd.f32 %v1665, %v1393
    %v1668 = vadd.f32 %v1666, %v1394
    %1669 = vmatprep.subr.mxu0 0.0
    %1670 = vmatpush1.msra.mxu0 %v1667
    %1671 = vmatprep.subr.mxu0 0.0
    %1672 = vmatpush1.msra.mxu0 0.0
    %1673 = vmatprep.subr.mxu0 0.0
    %1674 = vmatpush1.msra.mxu0 0.0
    %1675 = vmatprep.subr.mxu0 0.0
    %1676 = vmatpush1.msra.mxu0 0.0
    %1677 = vmatprep.subr.mxu0 0.0
    %1678 = vmatpush1.msra.mxu0 0.0
    %1679 = vmatprep.subr.mxu0 0.0
    %1680 = vmatpush1.msra.mxu0 0.0
    %1681 = vmatprep.subr.mxu0 0.0
    %1682 = vmatpush1.msra.mxu0 0.0
    %1683 = vmatprep.subr.mxu0 0.0
    %1684 = vmatpush1.msra.mxu0 0.0
    %1685 = vmatprep.subr.mxu0 0.0
    %1686 = vmatpush1.msra.mxu0 0.0
    %1687 = vmatprep.subr.mxu0 0.0
    %1688 = vmatpush1.msra.mxu0 0.0
    %1689 = vmatprep.subr.mxu0 0.0
    %1690 = vmatpush1.msra.mxu0 0.0
    %1691 = vmatprep.subr.mxu0 0.0
    %1692 = vmatpush1.msra.mxu0 0.0
    %1693 = vmatprep.subr.mxu0 0.0
    %1694 = vmatpush1.msra.mxu0 0.0
    %1695 = vmatprep.subr.mxu0 0.0
    %1696 = vmatpush1.msra.mxu0 0.0
    %1697 = vmatprep.subr.mxu0 0.0
    %1698 = vmatpush1.msra.mxu0 0.0
    %1699 = vmatprep.subr.mxu0 0.0
    %1700 = vmatpush1.msra.mxu0 0.0
    %1701 = vmatprep.subr.mxu0 0.0
    %1702 = vmatpush1.msra.mxu0 0.0
    %1703 = vmatprep.subr.mxu0 0.0
    %1704 = vmatpush1.msra.mxu0 0.0
    %1705 = vmatprep.subr.mxu0 0.0
    %1706 = vmatpush1.msra.mxu0 0.0
    %1707 = vmatprep.subr.mxu0 0.0
    %1708 = vmatpush1.msra.mxu0 0.0
    %1709 = vmatprep.subr.mxu0 0.0
    %1710 = vmatpush1.msra.mxu0 0.0
    %1711 = vmatprep.subr.mxu0 0.0
    %1712 = vmatpush1.msra.mxu0 0.0
    %1713 = vmatprep.subr.mxu0 0.0
    %1714 = vmatpush1.msra.mxu0 0.0
    %1715 = vmatprep.subr.mxu0 0.0
    %1716 = vmatpush1.msra.mxu0 0.0
    %1717 = vmatprep.subr.mxu0 0.0
    %1718 = vmatpush1.msra.mxu0 0.0
    %1719 = vmatprep.subr.mxu0 0.0
    %1720 = vmatpush1.msra.mxu0 0.0
    %1721 = vmatprep.subr.mxu0 0.0
    %1722 = vmatpush1.msra.mxu0 0.0
    %1723 = vmatprep.subr.mxu0 0.0
    %1724 = vmatpush1.msra.mxu0 0.0
    %1725 = vmatprep.subr.mxu0 0.0
    %1726 = vmatpush1.msra.mxu0 0.0
    %1727 = vmatprep.subr.mxu0 0.0
    %1728 = vmatpush1.msra.mxu0 0.0
    %1729 = vmatprep.subr.mxu0 0.0
    %1730 = vmatpush1.msra.mxu0 0.0
    %1731 = vmatprep.subr.mxu0 0.0
    %1732 = vmatpush1.msra.mxu0 0.0
    %1733 = vmatprep.mubr.f32.mxu0 0.0
    %1734 = vmatmul.mubr.f32.gmra.mrb[0].mxu0 %v1112
    %v1735 = vpop.f32.mrb[0].mxu0
    %v1736 = vadd.f32 0.0, %v1735
    %v1737 = vpop.f32.mrb[0].mxu0
    %1738 = vdwg.mxu0
    %1739 = vmatprep.subr.mxu0 0.0
    %1740 = vmatpush1.msra.mxu0 %v1668
    %1741 = vmatprep.subr.mxu0 0.0
    %1742 = vmatpush1.msra.mxu0 0.0
    %1743 = vmatprep.subr.mxu0 0.0
    %1744 = vmatpush1.msra.mxu0 0.0
    %1745 = vmatprep.subr.mxu0 0.0
    %1746 = vmatpush1.msra.mxu0 0.0
    %1747 = vmatprep.subr.mxu0 0.0
    %1748 = vmatpush1.msra.mxu0 0.0
    %1749 = vmatprep.subr.mxu0 0.0
    %1750 = vmatpush1.msra.mxu0 0.0
    %1751 = vmatprep.subr.mxu0 0.0
    %1752 = vmatpush1.msra.mxu0 0.0
    %1753 = vmatprep.subr.mxu0 0.0
    %1754 = vmatpush1.msra.mxu0 0.0
    %1755 = vmatprep.subr.mxu0 0.0
    %1756 = vmatpush1.msra.mxu0 0.0
    %1757 = vmatprep.subr.mxu0 0.0
    %1758 = vmatpush1.msra.mxu0 0.0
    %1759 = vmatprep.subr.mxu0 0.0
    %1760 = vmatpush1.msra.mxu0 0.0
    %1761 = vmatprep.subr.mxu0 0.0
    %1762 = vmatpush1.msra.mxu0 0.0
    %1763 = vmatprep.subr.mxu0 0.0
    %1764 = vmatpush1.msra.mxu0 0.0
    %1765 = vmatprep.subr.mxu0 0.0
    %1766 = vmatpush1.msra.mxu0 0.0
    %1767 = vmatprep.subr.mxu0 0.0
    %1768 = vmatpush1.msra.mxu0 0.0
    %1769 = vmatprep.subr.mxu0 0.0
    %1770 = vmatpush1.msra.mxu0 0.0
    %1771 = vmatprep.subr.mxu0 0.0
    %1772 = vmatpush1.msra.mxu0 0.0
    %1773 = vmatprep.subr.mxu0 0.0
    %1774 = vmatpush1.msra.mxu0 0.0
    %1775 = vmatprep.subr.mxu0 0.0
    %1776 = vmatpush1.msra.mxu0 0.0
    %1777 = vmatprep.subr.mxu0 0.0
    %1778 = vmatpush1.msra.mxu0 0.0
    %1779 = vmatprep.subr.mxu0 0.0
    %1780 = vmatpush1.msra.mxu0 0.0
    %1781 = vmatprep.subr.mxu0 0.0
    %1782 = vmatpush1.msra.mxu0 0.0
    %1783 = vmatprep.subr.mxu0 0.0
    %1784 = vmatpush1.msra.mxu0 0.0
    %1785 = vmatprep.subr.mxu0 0.0
    %1786 = vmatpush1.msra.mxu0 0.0
    %1787 = vmatprep.subr.mxu0 0.0
    %1788 = vmatpush1.msra.mxu0 0.0
    %1789 = vmatprep.subr.mxu0 0.0
    %1790 = vmatpush1.msra.mxu0 0.0
    %1791 = vmatprep.subr.mxu0 0.0
    %1792 = vmatpush1.msra.mxu0 0.0
    %1793 = vmatprep.subr.mxu0 0.0
    %1794 = vmatpush1.msra.mxu0 0.0
    %1795 = vmatprep.subr.mxu0 0.0
    %1796 = vmatpush1.msra.mxu0 0.0
    %1797 = vmatprep.subr.mxu0 0.0
    %1798 = vmatpush1.msra.mxu0 0.0
    %1799 = vmatprep.subr.mxu0 0.0
    %1800 = vmatpush1.msra.mxu0 0.0
    %1801 = vmatprep.subr.mxu0 0.0
    %1802 = vmatpush1.msra.mxu0 0.0
    %1803 = vmatprep.mubr.f32.mxu0 0.0
    %1804 = vmatmul.mubr.f32.gmra.mrb[0].mxu0 %v1185
    %v1805 = vpop.f32.mrb[0].mxu0
    %v1806 = vadd.f32 0.0, %v1805
    %v1807 = vpop.f32.mrb[0].mxu0
    %1808 = vdwg.mxu0
    %v1809 = vld [vmem:[%s12] sm:$0xff]
    %v1810 = vld [vmem:[%s12 + $0x8] sm:$0xff]
    %v1811 = vld [vmem:[%s12 + $0x10] sm:$0xff]
    %v1812 = vld [vmem:[%s12 + $0x18] sm:$0xff]
    %v1813 = vld [vmem:[%s13] sm:$0x1]
    %v1815 = vlaneseq
    %v1816 = vshrl.u32 %v1815, 7
    %v1817 = vsub.s32 0, %v1816
    %v1818 = vrot.slane %v1813, %v1817
    %v1821 = vsel %vm525, %v1736, 0
    %v1824 = vsel %vm525, %v1806, 0
    %1826 = vmatprep.subr.mxu0 0.0
    %1827 = vmatpush1.msra.mxu0 %v1809
    %1828 = vmatprep.subr.mxu0 0.0
    %1829 = vmatpush1.msra.mxu0 %v1810
    %1830 = vmatprep.subr.mxu0 0.0
    %1831 = vmatpush1.msra.mxu0 %v1811
    %1832 = vmatprep.subr.mxu0 0.0
    %1833 = vmatpush1.msra.mxu0 %v1812
    %1834 = vmatprep.subr.mxu0 0.0
    %1835 = vmatpush1.msra.mxu0 0.0
    %1836 = vmatprep.subr.mxu0 0.0
    %1837 = vmatpush1.msra.mxu0 0.0
    %1838 = vmatprep.subr.mxu0 0.0
    %1839 = vmatpush1.msra.mxu0 0.0
    %1840 = vmatprep.subr.mxu0 0.0
    %1841 = vmatpush1.msra.mxu0 0.0
    %1842 = vmatprep.subr.mxu0 0.0
    %1843 = vmatpush1.msra.mxu0 0.0
    %1844 = vmatprep.subr.mxu0 0.0
    %1845 = vmatpush1.msra.mxu0 0.0
    %1846 = vmatprep.subr.mxu0 0.0
    %1847 = vmatpush1.msra.mxu0 0.0
    %1848 = vmatprep.subr.mxu0 0.0
    %1849 = vmatpush1.msra.mxu0 0.0
    %1850 = vmatprep.subr.mxu0 0.0
    %1851 = vmatpush1.msra.mxu0 0.0
    %1852 = vmatprep.subr.mxu0 0.0
    %1853 = vmatpush1.msra.mxu0 0.0
    %1854 = vmatprep.subr.mxu0 0.0
    %1855 = vmatpush1.msra.mxu0 0.0
    %1856 = vmatprep.subr.mxu0 0.0
    %1857 = vmatpush1.msra.mxu0 0.0
    %1858 = vmatprep.subr.mxu0 0.0
    %1859 = vmatpush1.msra.mxu0 0.0
    %1860 = vmatprep.subr.mxu0 0.0
    %1861 = vmatpush1.msra.mxu0 0.0
    %1862 = vmatprep.subr.mxu0 0.0
    %1863 = vmatpush1.msra.mxu0 0.0
    %1864 = vmatprep.subr.mxu0 0.0
    %1865 = vmatpush1.msra.mxu0 0.0
    %1866 = vmatprep.subr.mxu0 0.0
    %1867 = vmatpush1.msra.mxu0 0.0
    %1868 = vmatprep.subr.mxu0 0.0
    %1869 = vmatpush1.msra.mxu0 0.0
    %1870 = vmatprep.subr.mxu0 0.0
    %1871 = vmatpush1.msra.mxu0 0.0
    %1872 = vmatprep.subr.mxu0 0.0
    %1873 = vmatpush1.msra.mxu0 0.0
    %1874 = vmatprep.subr.mxu0 0.0
    %1875 = vmatpush1.msra.mxu0 0.0
    %1876 = vmatprep.subr.mxu0 0.0
    %1877 = vmatpush1.msra.mxu0 0.0
    %1878 = vmatprep.subr.mxu0 0.0
    %1879 = vmatpush1.msra.mxu0 0.0
    %1880 = vmatprep.subr.mxu0 0.0
    %1881 = vmatpush1.msra.mxu0 0.0
    %1882 = vmatprep.subr.mxu0 0.0
    %1883 = vmatpush1.msra.mxu0 0.0
    %1884 = vmatprep.subr.mxu0 0.0
    %1885 = vmatpush1.msra.mxu0 0.0
    %1886 = vmatprep.subr.mxu0 0.0
    %1887 = vmatpush1.msra.mxu0 0.0
    %1888 = vmatprep.subr.mxu0 0.0
    %1889 = vmatpush1.msra.mxu0 0.0
    %1890 = vmatprep.mubr.f32.mxu0 0.0
    %1891 = vmatmul.mubr.f32.gmra.mrb[0].mxu0 %v1821
    %v1892 = vpop.f32.mrb[0].mxu0
    %v1893 = vadd.f32 %v1818, %v1892
    %v1894 = vpop.f32.mrb[0].mxu0
    %1895 = vmatprep.mubr.f32.mxu0 0.0
    %1896 = vmatmul.mubr.f32.gmra.mrb[0].mxu0 %v1824
    %v1897 = vpop.f32.mrb[0].mxu0
    %v1898 = vadd.f32 %v1818, %v1897
    %v1899 = vpop.f32.mrb[0].mxu0
    %1900 = vdwg.mxu0
    %v1901 = vmul.f32 %v1893, %v1893
    %v1902 = vmul.f32 %v1898, %v1898
    %1903 = vadd.xlane.f32.xlu0 %v1901
    %v1904 = vpop.xlane.xlu0 %1903
    %1905 = vadd.xlane.f32.xlu0 %v1902
    %v1906 = vpop.xlane.xlu0 %1905
    %v1907 = vmax.f32 %v1904, 1e-24
    %v1908 = vmax.f32 %v1906, 1e-24
    %v1909 = vrsqrt.pop %v1907
    %v1910 = vrsqrt.pop %v1908
    %v1911 = vmul.f32 %v1893, %v1909
    %v1912 = vmul.f32 %v1898, %v1910
    %1913 = vst [vmem:[#allocation6] sm:$0xff] %v1911
    %1914 = vst [vmem:[#allocation6 + $0x8] sm:$0xff] %v1912
    %v1915 = vrot.slane %v1911, 4
    %v1916 = vmax.f32 %v1911, %v1915
    %v1917 = vrot.slane %v1916, 2
    %v1918 = vmax.f32 %v1916, %v1917
    %v1919 = vrot.slane %v1918, 1
    %v1920 = vmax.f32 %v1918, %v1919
    %v1921 = vrot.slane %v1912, 4
    %v1922 = vmax.f32 %v1912, %v1921
    %v1923 = vrot.slane %v1922, 2
    %v1924 = vmax.f32 %v1922, %v1923
    %v1925 = vrot.slane %v1924, 1
    %v1926 = vmax.f32 %v1924, %v1925
    %v1927 = vld [vmem:[%s14] sm:$0xff]
    %v1928 = vld [vmem:[%s14 + $0x8] sm:$0xff]
    %v1929 = vld [vmem:[%s14 + $0x10] sm:$0xff]
    %v1930 = vld [vmem:[%s14 + $0x18] sm:$0xff]
    %v1931 = vld [vmem:[%s14 + $0x20] sm:$0xff]
    %v1932 = vld [vmem:[%s14 + $0x28] sm:$0xff]
    %v1933 = vld [vmem:[%s14 + $0x30] sm:$0xff]
    %v1934 = vld [vmem:[%s14 + $0x38] sm:$0xff]
    %v1935 = vld [vmem:[%s14 + $0x40] sm:$0xff]
    %v1936 = vld [vmem:[%s14 + $0x48] sm:$0xff]
    %v1937 = vld [vmem:[%s14 + $0x50] sm:$0xff]
    %v1938 = vld [vmem:[%s14 + $0x58] sm:$0xff]
    %v1939 = vld [vmem:[%s14 + $0x60] sm:$0xff]
    %v1940 = vld [vmem:[%s14 + $0x68] sm:$0xff]
    %v1941 = vld [vmem:[%s14 + $0x70] sm:$0xff]
    %v1942 = vld [vmem:[%s14 + $0x78] sm:$0xff]
    %v1943 = vld [vmem:[%s15] sm:$0x1]
    %v1945 = vlaneseq
    %v1946 = vshrl.u32 %v1945, 7
    %v1947 = vsub.s32 0, %v1946
    %v1948 = vrot.slane %v1943, %v1947
    %vm1952 = vcmask 1041409
    %v1953 = vsel %vm1952, %v1926, %v1920
    %1955 = vmatprep.subr.mxu0 0.0
    %1956 = vmatpush1.msra.mxu0 %v1927
    %1957 = vmatprep.subr.mxu0 0.0
    %1958 = vmatpush1.msra.mxu0 %v1928
    %1959 = vmatprep.subr.mxu0 0.0
    %1960 = vmatpush1.msra.mxu0 %v1929
    %1961 = vmatprep.subr.mxu0 0.0
    %1962 = vmatpush1.msra.mxu0 %v1930
    %1963 = vmatprep.subr.mxu0 0.0
    %1964 = vmatpush1.msra.mxu0 %v1931
    %1965 = vmatprep.subr.mxu0 0.0
    %1966 = vmatpush1.msra.mxu0 %v1932
    %1967 = vmatprep.subr.mxu0 0.0
    %1968 = vmatpush1.msra.mxu0 %v1933
    %1969 = vmatprep.subr.mxu0 0.0
    %1970 = vmatpush1.msra.mxu0 %v1934
    %1971 = vmatprep.subr.mxu0 0.0
    %1972 = vmatpush1.msra.mxu0 %v1935
    %1973 = vmatprep.subr.mxu0 0.0
    %1974 = vmatpush1.msra.mxu0 %v1936
    %1975 = vmatprep.subr.mxu0 0.0
    %1976 = vmatpush1.msra.mxu0 %v1937
    %1977 = vmatprep.subr.mxu0 0.0
    %1978 = vmatpush1.msra.mxu0 %v1938
    %1979 = vmatprep.subr.mxu0 0.0
    %1980 = vmatpush1.msra.mxu0 %v1939
    %1981 = vmatprep.subr.mxu0 0.0
    %1982 = vmatpush1.msra.mxu0 %v1940
    %1983 = vmatprep.subr.mxu0 0.0
    %1984 = vmatpush1.msra.mxu0 %v1941
    %1985 = vmatprep.subr.mxu0 0.0
    %1986 = vmatpush1.msra.mxu0 %v1942
    %1987 = vmatprep.subr.mxu0 0.0
    %1988 = vmatpush1.msra.mxu0 0.0
    %1989 = vmatprep.subr.mxu0 0.0
    %1990 = vmatpush1.msra.mxu0 0.0
    %1991 = vmatprep.subr.mxu0 0.0
    %1992 = vmatpush1.msra.mxu0 0.0
    %1993 = vmatprep.subr.mxu0 0.0
    %1994 = vmatpush1.msra.mxu0 0.0
    %1995 = vmatprep.subr.mxu0 0.0
    %1996 = vmatpush1.msra.mxu0 0.0
    %1997 = vmatprep.subr.mxu0 0.0
    %1998 = vmatpush1.msra.mxu0 0.0
    %1999 = vmatprep.subr.mxu0 0.0
    %2000 = vmatpush1.msra.mxu0 0.0
    %2001 = vmatprep.subr.mxu0 0.0
    %2002 = vmatpush1.msra.mxu0 0.0
    %2003 = vmatprep.subr.mxu0 0.0
    %2004 = vmatpush1.msra.mxu0 0.0
    %2005 = vmatprep.subr.mxu0 0.0
    %2006 = vmatpush1.msra.mxu0 0.0
    %2007 = vmatprep.subr.mxu0 0.0
    %2008 = vmatpush1.msra.mxu0 0.0
    %2009 = vmatprep.subr.mxu0 0.0
    %2010 = vmatpush1.msra.mxu0 0.0
    %2011 = vmatprep.subr.mxu0 0.0
    %2012 = vmatpush1.msra.mxu0 0.0
    %2013 = vmatprep.subr.mxu0 0.0
    %2014 = vmatpush1.msra.mxu0 0.0
    %2015 = vmatprep.subr.mxu0 0.0
    %2016 = vmatpush1.msra.mxu0 0.0
    %2017 = vmatprep.subr.mxu0 0.0
    %2018 = vmatpush1.msra.mxu0 0.0
    %2019 = vmatprep.mubr.f32.mxu0 0.0
    %2020 = vmatmul.mubr.f32.gmra.mrb[0].mxu0 %v1953
    %v2021 = vpop.f32.mrb[0].mxu0
    %v2022 = vadd.f32 %v1948, %v2021
    %v2023 = vpop.f32.mrb[0].mxu0
    %2024 = vdwg.mxu0
    %vm2025 = vcmp.gt.f32.partialorder %v2022, 0.0
    %v2026 = vmul.f32 %v2022, 0.2
    %v2027 = vsel %vm2025, %v2022, %v2026
    %v2028 = vld [vmem:[%s16] sm:$0xff]
    %v2029 = vld [vmem:[%s17] sm:$0x1]
    %v2031 = vlaneseq
    %v2032 = vshrl.u32 %v2031, 7
    %v2033 = vsub.s32 0, %v2032
    %v2034 = vrot.slane %v2029, %v2033
    %v2037 = vsel %vm76, %v2027, 0
    %2039 = vmatprep.subr.mxu0 0.0
    %2040 = vmatpush1.msra.mxu0 %v2028
    %2041 = vmatprep.subr.mxu0 0.0
    %2042 = vmatpush1.msra.mxu0 0.0
    %2043 = vmatprep.subr.mxu0 0.0
    %2044 = vmatpush1.msra.mxu0 0.0
    %2045 = vmatprep.subr.mxu0 0.0
    %2046 = vmatpush1.msra.mxu0 0.0
    %2047 = vmatprep.subr.mxu0 0.0
    %2048 = vmatpush1.msra.mxu0 0.0
    %2049 = vmatprep.subr.mxu0 0.0
    %2050 = vmatpush1.msra.mxu0 0.0
    %2051 = vmatprep.subr.mxu0 0.0
    %2052 = vmatpush1.msra.mxu0 0.0
    %2053 = vmatprep.subr.mxu0 0.0
    %2054 = vmatpush1.msra.mxu0 0.0
    %2055 = vmatprep.subr.mxu0 0.0
    %2056 = vmatpush1.msra.mxu0 0.0
    %2057 = vmatprep.subr.mxu0 0.0
    %2058 = vmatpush1.msra.mxu0 0.0
    %2059 = vmatprep.subr.mxu0 0.0
    %2060 = vmatpush1.msra.mxu0 0.0
    %2061 = vmatprep.subr.mxu0 0.0
    %2062 = vmatpush1.msra.mxu0 0.0
    %2063 = vmatprep.subr.mxu0 0.0
    %2064 = vmatpush1.msra.mxu0 0.0
    %2065 = vmatprep.subr.mxu0 0.0
    %2066 = vmatpush1.msra.mxu0 0.0
    %2067 = vmatprep.subr.mxu0 0.0
    %2068 = vmatpush1.msra.mxu0 0.0
    %2069 = vmatprep.subr.mxu0 0.0
    %2070 = vmatpush1.msra.mxu0 0.0
    %2071 = vmatprep.subr.mxu0 0.0
    %2072 = vmatpush1.msra.mxu0 0.0
    %2073 = vmatprep.subr.mxu0 0.0
    %2074 = vmatpush1.msra.mxu0 0.0
    %2075 = vmatprep.subr.mxu0 0.0
    %2076 = vmatpush1.msra.mxu0 0.0
    %2077 = vmatprep.subr.mxu0 0.0
    %2078 = vmatpush1.msra.mxu0 0.0
    %2079 = vmatprep.subr.mxu0 0.0
    %2080 = vmatpush1.msra.mxu0 0.0
    %2081 = vmatprep.subr.mxu0 0.0
    %2082 = vmatpush1.msra.mxu0 0.0
    %2083 = vmatprep.subr.mxu0 0.0
    %2084 = vmatpush1.msra.mxu0 0.0
    %2085 = vmatprep.subr.mxu0 0.0
    %2086 = vmatpush1.msra.mxu0 0.0
    %2087 = vmatprep.subr.mxu0 0.0
    %2088 = vmatpush1.msra.mxu0 0.0
    %2089 = vmatprep.subr.mxu0 0.0
    %2090 = vmatpush1.msra.mxu0 0.0
    %2091 = vmatprep.subr.mxu0 0.0
    %2092 = vmatpush1.msra.mxu0 0.0
    %2093 = vmatprep.subr.mxu0 0.0
    %2094 = vmatpush1.msra.mxu0 0.0
    %2095 = vmatprep.subr.mxu0 0.0
    %2096 = vmatpush1.msra.mxu0 0.0
    %2097 = vmatprep.subr.mxu0 0.0
    %2098 = vmatpush1.msra.mxu0 0.0
    %2099 = vmatprep.subr.mxu0 0.0
    %2100 = vmatpush1.msra.mxu0 0.0
    %2101 = vmatprep.subr.mxu0 0.0
    %2102 = vmatpush1.msra.mxu0 0.0
    %2103 = vmatprep.mubr.f32.mxu0 0.0
    %2104 = vmatmul.mubr.f32.gmra.mrb[0].mxu0 %v2037
    %v2105 = vpop.f32.mrb[0].mxu0
    %v2106 = vadd.f32 %v2034, %v2105
    %v2107 = vpop.f32.mrb[0].mxu0
    %2108 = vdwg.mxu0
    %2109 = vst [vmem:[#allocation8] sm:$0x3] %v2106
    %s2110 = smul.u32 2, 8
    %s2111 = smul.u32 %s2110, 1
    %s2112 = sshll.u32 %s2111, 4
    %2113 = dma.done [#allocation3], %s2112
    // Predicated region
    $region78: #{net_ge_forward.1} parent=1 // pred_check
      _
    $region79: #{net_ge_forward.1} parent=1 // pred_check_branch
      %2115 = sbr.rel (0) target = $region81
    $region80: #{net_ge_forward.1} parent=1 // pred_region
      %s2117 = ssub.s32 256, 256
      %2118 = vsyncadd [#allocation5], %s2117
      %s2119 = sshll.u32 [#allocation4], 4
      %s2120 = int_to_ptr.vmem [resolvable:$true] %s2119
      %2125 = dma.vmem_to_hbm [thread:$0]  %s2120, 256, %s18, [#allocation5], 128, 128, 8
    $region81: #{net_ge_forward.1} parent=1 // pred_fallthru
      _
    // Predicated region
    $region82: #{net_ge_forward.1} parent=1 // pred_check
      _
    $region83: #{net_ge_forward.1} parent=1 // pred_check_branch
      %2127 = sbr.rel (0) target = $region85
    $region84: #{net_ge_forward.1} parent=1 // pred_region
      %s2129 = ssub.s32 256, 256
      %2130 = vsyncadd [#allocation7], %s2129
      %s2131 = sshll.u32 [#allocation6], 4
      %s2132 = int_to_ptr.vmem [resolvable:$true] %s2131
      %2137 = dma.vmem_to_hbm [thread:$0]  %s2132, 256, %s20, [#allocation7], 128, 128, 8
    $region85: #{net_ge_forward.1} parent=1 // pred_fallthru
      _
    // Predicated region
    $region86: #{net_ge_forward.1} parent=1 // pred_check
      _
    $region87: #{net_ge_forward.1} parent=1 // pred_check_branch
      %2139 = sbr.rel (0) target = $region89
    $region88: #{net_ge_forward.1} parent=1 // pred_region
      %s2141 = ssub.s32 32, 32
      %2142 = vsyncadd [#allocation7], %s2141
      %s2144 = sshll.u32 [#allocation8], 4
      %s2145 = int_to_ptr.vmem [resolvable:$true] %s2144
      %2147 = dma.vmem_to_hbm [thread:$0]  %s2145, 32, %s21, [#allocation7]
    $region89: #{net_ge_forward.1} parent=1 // pred_fallthru
      _
    // Predicated region
    $region90: #{net_ge_forward.1} parent=1 // pred_check
      _
    $region91: #{net_ge_forward.1} parent=1 // pred_check_branch
      %2149 = sbr.rel (0) target = $region93
    $region92: #{net_ge_forward.1} parent=1 // pred_region
      %2150 = dma.done [#allocation5], 256
    $region93: #{net_ge_forward.1} parent=1 // pred_fallthru
      _
    // Predicated region
    $region94: #{net_ge_forward.1} parent=1 // pred_check
      _
    $region95: #{net_ge_forward.1} parent=1 // pred_check_branch
      %2152 = sbr.rel (0) target = $region97
    $region96: #{net_ge_forward.1} parent=1 // pred_region
      %2153 = dma.done [#allocation7], 256
    $region97: #{net_ge_forward.1} parent=1 // pred_fallthru
      _
    // Predicated region
    $region98: #{net_ge_forward.1} parent=1 // pred_check
      _
    $region99: #{net_ge_forward.1} parent=1 // pred_check_branch
      %2155 = sbr.rel (0) target = $region101
    $region100: #{net_ge_forward.1} parent=1 // pred_region
      %2156 = dma.done [#allocation7], 32
    $region101: #{net_ge_forward.1} parent=1 // pred_fallthru
      _
    %2157 = vsyncpa [#allocation5], 1
    %2158 = vsyncpa [#allocation7], 1
  %2159 = vsyncmov [#allocation3]
  %s2160 = vpop.sfrf %2159
  %p2161 = scmp.eq.s32.totalorder %s2160, 0
  %p2162 = pneg %p2161
  %2164 = shalt.err (%p2162)

</llo_original>
